<compile_context>
chip_gen: v7x
topology: tpu7x:2x2x1
jax: 0.10.0
libtpu: 0.0.40
codegen_flags: <defaults>
</compile_context>

<pallas_src>
import jax
import jax.numpy as jnp
import numpy as np
from jax.experimental import pallas as pl
from jax.experimental.pallas import tpu as pltpu

LRELU_SLOPE = 0.01
BN_EPS = 1e-5


def _ceil_to(x, m):
    return (x + m - 1) // m * m


# ------------------------------ fused ResBlock kernel -------------------------
def _make_resblock_kernel(depth, lp, shifts, inv_res, inv_dn):
    """Fused: depth x ResidualConnection (shared-weight conv+BN+LReLU twice +
    residual add) followed by the stride-2 DownSample conv+BN+LReLU (evaluated
    at full resolution; stride-2 positions selected by `maskd` for the BN stats
    and extracted by the wrapper)."""

    def taps(v):
        # (Cp, Lp) f32 -> (9*Cp, Lp) bf16 tap stack along the contraction axis.
        # Rolls are done in f32 (8-row tiles, clean concat) then cast once.
        pieces = []
        for d in shifts:
            s = (-d) % lp
            pieces.append(pltpu.roll(v, shift=s, axis=1) if s else v)
        return jnp.concatenate(pieces, axis=0).astype(jnp.bfloat16)

    def conv(w_f32, v):
        # ONE MXU matmul per conv: (Op, 9*Cp) @ (9*Cp, Lp) -> (Op, Lp) f32.
        return jnp.dot(w_f32.astype(jnp.bfloat16), taps(v),
                       preferred_element_type=jnp.float32)

    def bn_lrelu(acc, gamma, beta, m, inv_cnt):
        # Single-pass training-mode BN over the masked positions (f32).
        am = acc * m
        mean = jnp.sum(am, axis=1, keepdims=True) * inv_cnt
        ex2 = jnp.sum(am * acc, axis=1, keepdims=True) * inv_cnt
        var = ex2 - mean * mean
        scale = gamma * jax.lax.rsqrt(var + BN_EPS)   # fold gamma into rsqrt
        y = (acc - mean) * scale + beta
        return jnp.where(y >= 0, y, LRELU_SLOPE * y)  # LeakyReLU(0.01)

    def kernel(x_ref, wr_ref, gr_ref, br_ref, wd_ref, gd_ref, bd_ref,
               mask_ref, maskd_ref, o_ref):
        mask = mask_ref[...]                          # (1, Lp) interior mask
        x = x_ref[...]                                # (Cp, Lp) f32
        for i in range(depth):                        # static unroll
            w, g, b = wr_ref[i], gr_ref[i], br_ref[i]
            y = bn_lrelu(conv(w, x), g, b, mask, inv_res) * mask   # re-zero halo
            y = bn_lrelu(conv(w, y), g, b, mask, inv_res) * mask   # shared weights
            x = x + y                                 # residual add (halo stays 0)
        acc = conv(wd_ref[...], x)                    # (CoutP, Lp)
        o_ref[...] = bn_lrelu(acc, gd_ref[...], bd_ref[...],
                              maskd_ref[...], inv_dn)

    return kernel


# --------------------------------- weight packing ------------------------------
def _pack_tap_weights(w_oihw, op, cip):
    """(O, I, 3, 3) -> (Op, 9*Cip) with column t*Cip + i = W[o, i, kh_t, kw_t]."""
    o, i = w_oihw.shape[0], w_oihw.shape[1]
    w9 = jnp.transpose(w_oihw, (2, 3, 0, 1)).reshape(9, o, i)   # t = kh*3 + kw
    w9 = jnp.transpose(w9, (1, 0, 2))                           # (O, 9, I)
    wrow = jnp.zeros((op, 9, cip), jnp.float32).at[:o, :, :i].set(w9)
    return wrow.reshape(op, 9 * cip)


def _pad_vec(v, rows):
    return jnp.zeros((rows, 1), jnp.float32).at[:v.shape[0], 0].set(v)


# --------------------------------- ResBlock forward ----------------------------
def res_block_forward(x_nchw, params):
    n, c_in, h, w = x_nchw.shape
    c_out = params["down"]["w"].shape[0]
    depth = len(params["res_layers"])
    hp, wp = h + 2, w + 2
    ho = (h + 2 - 3) // 2 + 1
    wo = (w + 2 - 3) // 2 + 1
    l = n * hp * wp
    lp = _ceil_to(l, 128)                 # lane-dense flat length
    cp = _ceil_to(c_in, 8)                # sublane-aligned channel counts
    coutp = _ceil_to(c_out, 8)
    shifts = [(kh - 1) * wp + (kw - 1) for kh in range(3) for kw in range(3)]

    # Pack x once into the lane-dense padded-flat layout (Cp, Lp).
    xp = jnp.pad(x_nchw, ((0, 0), (0, 0), (1, 1), (1, 1)))
    xt = jnp.transpose(xp, (1, 0, 2, 3)).reshape(c_in, l).astype(jnp.float32)
    x_flat = jnp.zeros((cp, lp), jnp.float32).at[:c_in, :l].set(xt)

    # Interior mask (residual BN / halo re-zero) and stride-2 mask (down BN).
    hh = jnp.arange(hp)
    ww = jnp.arange(wp)
    in_h = (hh >= 1) & (hh <= hp - 2)
    in_w = (ww >= 1) & (ww <= wp - 2)
    m2d = (in_h[:, None] & in_w[None, :]).astype(jnp.float32)
    mask = jnp.zeros((1, lp), jnp.float32).at[0, :l].set(
        jnp.tile(m2d.reshape(-1), n))

    dn_h = (hh >= 1) & ((hh % 2) == 1) & (hh <= 2 * (ho - 1) + 1)
    dn_w = (ww >= 1) & ((ww % 2) == 1) & (ww <= 2 * (wo - 1) + 1)
    m2d_dn = (dn_h[:, None] & dn_w[None, :]).astype(jnp.float32)
    mask_dn = jnp.zeros((1, lp), jnp.float32).at[0, :l].set(
        jnp.tile(m2d_dn.reshape(-1), n))

    # Stack residual-layer params along a leading depth axis (one DMA each).
    wr = jnp.stack([_pack_tap_weights(p["w"], cp, cp)
                    for p in params["res_layers"]])            # (depth, Cp, 9Cp)
    gr = jnp.stack([_pad_vec(p["gamma"], cp) for p in params["res_layers"]])
    br = jnp.stack([_pad_vec(p["beta"], cp) for p in params["res_layers"]])
    d = params["down"]
    wd = _pack_tap_weights(d["w"], coutp, cp)                  # (CoutP, 9Cp)
    gd = _pad_vec(d["gamma"], coutp)
    bd = _pad_vec(d["beta"], coutp)

    kernel = _make_resblock_kernel(depth, lp, shifts,
                                   1.0 / (n * h * w), 1.0 / (n * ho * wo))

    out_full = pl.pallas_call(
        kernel,
        out_shape=jax.ShapeDtypeStruct((coutp, lp), jnp.float32),
        grid=(1,),
        in_specs=[
            pl.BlockSpec((cp, lp), lambda i: (0, 0)),
            pl.BlockSpec((depth, cp, 9 * cp), lambda i: (0, 0, 0)),
            pl.BlockSpec((depth, cp, 1), lambda i: (0, 0, 0)),
            pl.BlockSpec((depth, cp, 1), lambda i: (0, 0, 0)),
            pl.BlockSpec((coutp, 9 * cp), lambda i: (0, 0)),
            pl.BlockSpec((coutp, 1), lambda i: (0, 0)),
            pl.BlockSpec((coutp, 1), lambda i: (0, 0)),
            pl.BlockSpec((1, lp), lambda i: (0, 0)),
            pl.BlockSpec((1, lp), lambda i: (0, 0)),
        ],
        out_specs=pl.BlockSpec((coutp, lp), lambda i: (0, 0)),
        compiler_params=pltpu.CompilerParams(dimension_semantics=("arbitrary",)),
    )(x_flat, wr, gr, br, wd, gd, bd, mask, mask_dn)

    # Extract the stride-2 output positions from the lane-dense full-res result.
    y = out_full[:c_out, :l].reshape(c_out, n, hp, wp)
    y = y[:, :, 1:2 * ho:2, 1:2 * wo:2]           # (Cout, N, Ho, Wo)
    return jnp.transpose(y, (1, 0, 2, 3))         # -> NCHW


# ----------------------------- pure-JAX reference ------------------------------
def _ref_layer(x, w, b, g, be, stride):
    y = jax.lax.conv_general_dilated(
        x, w, (stride, stride), ((1, 1), (1, 1)),
        dimension_numbers=("NCHW", "OIHW", "NCHW"))
    y = y + b[None, :, None, None]
    mean = jnp.mean(y, axis=(0, 2, 3), keepdims=True)
    var = jnp.mean((y - mean) ** 2, axis=(0, 2, 3), keepdims=True)
    y = (y - mean) * jax.lax.rsqrt(var + BN_EPS) * g[None, :, None, None] \
        + be[None, :, None, None]
    return jnp.where(y >= 0, y, LRELU_SLOPE * y)


def res_block_reference(x, params):
    for p in params["res_layers"]:
        r = x
        x = _ref_layer(x, p["w"], p["b"], p["gamma"], p["beta"], 1)
        x = _ref_layer(x, p["w"], p["b"], p["gamma"], p["beta"], 1)
        x = r + x
    d = params["down"]
    return _ref_layer(x, d["w"], d["b"], d["gamma"], d["beta"], 2)


# ----------------------------- parameter init ----------------------------------
def init_params(key, in_dim, out_dim, depth=2):
    params = {"res_layers": []}
    for _ in range(depth):
        key, k1, k2, k3, k4 = jax.random.split(key, 5)
        params["res_layers"].append(dict(
            w=0.2 * jax.random.normal(k1, (in_dim, in_dim, 3, 3), jnp.float32),
            b=0.1 * jax.random.normal(k2, (in_dim,), jnp.float32),
            gamma=1.0 + 0.1 * jax.random.normal(k3, (in_dim,), jnp.float32),
            beta=0.1 * jax.random.normal(k4, (in_dim,), jnp.float32),
        ))
    key, k1, k2, k3, k4 = jax.random.split(key, 5)
    params["down"] = dict(
        w=0.2 * jax.random.normal(k1, (out_dim, in_dim, 3, 3), jnp.float32),
        b=0.1 * jax.random.normal(k2, (out_dim,), jnp.float32),
        gamma=1.0 + 0.1 * jax.random.normal(k3, (out_dim,), jnp.float32),
        beta=0.1 * jax.random.normal(k4, (out_dim,), jnp.float32),
    )
    return params


if __name__ == "__main__":
    key = jax.random.PRNGKey(0)
    key, kx, kp = jax.random.split(key, 3)

    in_dim, out_dim, N, H, W = 4, 8, 2, 16, 16
    x = jax.random.normal(kx, (N, in_dim, H, W), jnp.float32)   # NCHW like PyTorch
    params = init_params(kp, in_dim, out_dim, depth=2)

    fwd = jax.jit(res_block_forward)
    out = jax.block_until_ready(fwd(x, params))

    ref = res_block_reference(x, params)
    assert out.shape == ref.shape == (N, out_dim, H // 2, W // 2), out.shape
    # Intentional precision contract: bf16 matmul operands with f32 accumulation
    # and single-pass f32 BN stats vs. a pure-f32 reference.
    np.testing.assert_allclose(np.asarray(out), np.asarray(ref),
                               rtol=2e-2, atol=3e-2)
    print("KERNEL_OK")
</pallas_src>

<mosaic_0001>
module attributes {stable_mosaic.version = 11 : i64} {
  func.func @kernel(%arg0: i32, %arg1: memref<8x768xf32, #tpu.memory_space<vmem>>, %arg2: memref<2x8x72xf32, #tpu.memory_space<vmem>>, %arg3: memref<2x8x1xf32, #tpu.memory_space<vmem>>, %arg4: memref<2x8x1xf32, #tpu.memory_space<vmem>>, %arg5: memref<8x72xf32, #tpu.memory_space<vmem>>, %arg6: memref<8x1xf32, #tpu.memory_space<vmem>>, %arg7: memref<8x1xf32, #tpu.memory_space<vmem>>, %arg8: memref<1x768xf32, #tpu.memory_space<vmem>>, %arg9: memref<1x768xf32, #tpu.memory_space<vmem>>, %arg10: memref<8x768xf32, #tpu.memory_space<vmem>>) attributes {dimension_semantics = [#tpu.dimension_semantics<arbitrary>], iteration_bounds = array<i64: 1>, scalar_prefetch = 0 : i64, scratch_operands = 0 : i64, tpu.core_type = #tpu.core_type<tc>, window_params = [{pipeline_mode = #tpu.pipeline_mode<synchronous>, transform_indices = @transform_0, window_bounds = array<i64: 8, 768>}, {pipeline_mode = #tpu.pipeline_mode<synchronous>, transform_indices = @transform_1, window_bounds = array<i64: 2, 8, 72>}, {pipeline_mode = #tpu.pipeline_mode<synchronous>, transform_indices = @transform_2, window_bounds = array<i64: 2, 8, 1>}, {pipeline_mode = #tpu.pipeline_mode<synchronous>, transform_indices = @transform_3, window_bounds = array<i64: 2, 8, 1>}, {pipeline_mode = #tpu.pipeline_mode<synchronous>, transform_indices = @transform_4, window_bounds = array<i64: 8, 72>}, {pipeline_mode = #tpu.pipeline_mode<synchronous>, transform_indices = @transform_5, window_bounds = array<i64: 8, 1>}, {pipeline_mode = #tpu.pipeline_mode<synchronous>, transform_indices = @transform_6, window_bounds = array<i64: 8, 1>}, {pipeline_mode = #tpu.pipeline_mode<synchronous>, transform_indices = @transform_7, window_bounds = array<i64: 1, 768>}, {pipeline_mode = #tpu.pipeline_mode<synchronous>, transform_indices = @transform_8, window_bounds = array<i64: 1, 768>}, {pipeline_mode = #tpu.pipeline_mode<synchronous>, transform_indices = @transform_9, window_bounds = array<i64: 8, 768>}]} {
    %c0 = arith.constant 0 : index
    %c0_0 = arith.constant 0 : index
    %0 = vector.load %arg8[%c0, %c0_0] : memref<1x768xf32, #tpu.memory_space<vmem>>, vector<1x768xf32>
    %c0_1 = arith.constant 0 : index
    %c0_2 = arith.constant 0 : index
    %1 = vector.load %arg1[%c0_1, %c0_2] : memref<8x768xf32, #tpu.memory_space<vmem>>, vector<8x768xf32>
    %c0_3 = arith.constant 0 : index
    %c0_4 = arith.constant 0 : index
    %c0_5 = arith.constant 0 : index
    %2 = vector.load %arg2[%c0_3, %c0_4, %c0_5] : memref<2x8x72xf32, #tpu.memory_space<vmem>>, vector<1x8x72xf32>
    %3 = vector.shape_cast %2 : vector<1x8x72xf32> to vector<8x72xf32>
    %c0_6 = arith.constant 0 : index
    %c0_7 = arith.constant 0 : index
    %c0_8 = arith.constant 0 : index
    %4 = vector.load %arg3[%c0_6, %c0_7, %c0_8] : memref<2x8x1xf32, #tpu.memory_space<vmem>>, vector<1x8x1xf32>
    %5 = vector.shape_cast %4 : vector<1x8x1xf32> to vector<8x1xf32>
    %c0_9 = arith.constant 0 : index
    %c0_10 = arith.constant 0 : index
    %c0_11 = arith.constant 0 : index
    %6 = vector.load %arg4[%c0_9, %c0_10, %c0_11] : memref<2x8x1xf32, #tpu.memory_space<vmem>>, vector<1x8x1xf32>
    %7 = vector.shape_cast %6 : vector<1x8x1xf32> to vector<8x1xf32>
    %8 = arith.truncf %3 : vector<8x72xf32> to vector<8x72xbf16>
    %c19_i32 = arith.constant 19 : i32
    %9 = tpu.dynamic_rotate %1 by %c19_i32 dim 1 : vector<8x768xf32>, i32 -> vector<8x768xf32>
    %c18_i32 = arith.constant 18 : i32
    %10 = tpu.dynamic_rotate %1 by %c18_i32 dim 1 : vector<8x768xf32>, i32 -> vector<8x768xf32>
    %c17_i32 = arith.constant 17 : i32
    %11 = tpu.dynamic_rotate %1 by %c17_i32 dim 1 : vector<8x768xf32>, i32 -> vector<8x768xf32>
    %c1_i32 = arith.constant 1 : i32
    %12 = tpu.dynamic_rotate %1 by %c1_i32 dim 1 : vector<8x768xf32>, i32 -> vector<8x768xf32>
    %c767_i32 = arith.constant 767 : i32
    %13 = tpu.dynamic_rotate %1 by %c767_i32 dim 1 : vector<8x768xf32>, i32 -> vector<8x768xf32>
    %c751_i32 = arith.constant 751 : i32
    %14 = tpu.dynamic_rotate %1 by %c751_i32 dim 1 : vector<8x768xf32>, i32 -> vector<8x768xf32>
    %c750_i32 = arith.constant 750 : i32
    %15 = tpu.dynamic_rotate %1 by %c750_i32 dim 1 : vector<8x768xf32>, i32 -> vector<8x768xf32>
    %c749_i32 = arith.constant 749 : i32
    %16 = tpu.dynamic_rotate %1 by %c749_i32 dim 1 : vector<8x768xf32>, i32 -> vector<8x768xf32>
    %17 = tpu.concatenate %9, %10, %11, %12, %1, %13, %14, %15, %16 in 0 : vector<8x768xf32>, vector<8x768xf32>, vector<8x768xf32>, vector<8x768xf32>, vector<8x768xf32>, vector<8x768xf32>, vector<8x768xf32>, vector<8x768xf32>, vector<8x768xf32> -> vector<72x768xf32>
    %18 = arith.truncf %17 : vector<72x768xf32> to vector<72x768xbf16>
    %cst = arith.constant dense<0.000000e+00> : vector<8x768xf32>
    %19 = tpu.matmul %8, %18, %cst {dimension_numbers = #tpu.dot_dimension_numbers<[1], [0], [0], [1], [0, 0, 1, 1], [], []>} : vector<8x72xbf16>, vector<72x768xbf16>, vector<8x768xf32> -> vector<8x768xf32>
    %20 = vector.broadcast %0 : vector<1x768xf32> to vector<8x768xf32>
    %21 = arith.mulf %19, %20 : vector<8x768xf32>
    %cst_12 = arith.constant dense<0.000000e+00> : vector<8xf32>
    %22 = vector.multi_reduction <add>, %21, %cst_12 [1] : vector<8x768xf32> to vector<8xf32>
    %23 = vector.shape_cast %22 : vector<8xf32> to vector<8x1xf32>
    %cst_13 = arith.constant 0.001953125 : f32
    %24 = vector.broadcast %cst_13 : f32 to vector<8x1xf32>
    %25 = arith.mulf %23, %24 : vector<8x1xf32>
    %26 = arith.mulf %21, %19 : vector<8x768xf32>
    %cst_14 = arith.constant dense<0.000000e+00> : vector<8xf32>
    %27 = vector.multi_reduction <add>, %26, %cst_14 [1] : vector<8x768xf32> to vector<8xf32>
    %28 = vector.shape_cast %27 : vector<8xf32> to vector<8x1xf32>
    %cst_15 = arith.constant 0.001953125 : f32
    %29 = vector.broadcast %cst_15 : f32 to vector<8x1xf32>
    %30 = arith.mulf %28, %29 : vector<8x1xf32>
    %31 = arith.mulf %25, %25 : vector<8x1xf32>
    %32 = arith.subf %30, %31 : vector<8x1xf32>
    %cst_16 = arith.constant 9.99999974E-6 : f32
    %33 = vector.broadcast %cst_16 : f32 to vector<8x1xf32>
    %34 = arith.addf %32, %33 : vector<8x1xf32>
    %35 = math.rsqrt %34 : vector<8x1xf32>
    %36 = arith.mulf %5, %35 : vector<8x1xf32>
    %37 = vector.broadcast %25 : vector<8x1xf32> to vector<8x768xf32>
    %38 = arith.subf %19, %37 : vector<8x768xf32>
    %39 = vector.broadcast %36 : vector<8x1xf32> to vector<8x768xf32>
    %40 = arith.mulf %38, %39 : vector<8x768xf32>
    %41 = vector.broadcast %7 : vector<8x1xf32> to vector<8x768xf32>
    %42 = arith.addf %40, %41 : vector<8x768xf32>
    %cst_17 = arith.constant 0.000000e+00 : f32
    %43 = vector.broadcast %cst_17 : f32 to vector<8x768xf32>
    %44 = arith.cmpf oge, %42, %43 : vector<8x768xf32>
    %cst_18 = arith.constant 0.00999999977 : f32
    %45 = vector.broadcast %cst_18 : f32 to vector<8x768xf32>
    %46 = arith.mulf %45, %42 : vector<8x768xf32>
    %47 = arith.select %44, %42, %46 : vector<8x768xi1>, vector<8x768xf32>
    %48 = vector.broadcast %0 : vector<1x768xf32> to vector<8x768xf32>
    %49 = arith.mulf %47, %48 : vector<8x768xf32>
    %50 = arith.truncf %3 : vector<8x72xf32> to vector<8x72xbf16>
    %c19_i32_19 = arith.constant 19 : i32
    %51 = tpu.dynamic_rotate %49 by %c19_i32_19 dim 1 : vector<8x768xf32>, i32 -> vector<8x768xf32>
    %c18_i32_20 = arith.constant 18 : i32
    %52 = tpu.dynamic_rotate %49 by %c18_i32_20 dim 1 : vector<8x768xf32>, i32 -> vector<8x768xf32>
    %c17_i32_21 = arith.constant 17 : i32
    %53 = tpu.dynamic_rotate %49 by %c17_i32_21 dim 1 : vector<8x768xf32>, i32 -> vector<8x768xf32>
    %c1_i32_22 = arith.constant 1 : i32
    %54 = tpu.dynamic_rotate %49 by %c1_i32_22 dim 1 : vector<8x768xf32>, i32 -> vector<8x768xf32>
    %c767_i32_23 = arith.constant 767 : i32
    %55 = tpu.dynamic_rotate %49 by %c767_i32_23 dim 1 : vector<8x768xf32>, i32 -> vector<8x768xf32>
    %c751_i32_24 = arith.constant 751 : i32
    %56 = tpu.dynamic_rotate %49 by %c751_i32_24 dim 1 : vector<8x768xf32>, i32 -> vector<8x768xf32>
    %c750_i32_25 = arith.constant 750 : i32
    %57 = tpu.dynamic_rotate %49 by %c750_i32_25 dim 1 : vector<8x768xf32>, i32 -> vector<8x768xf32>
    %c749_i32_26 = arith.constant 749 : i32
    %58 = tpu.dynamic_rotate %49 by %c749_i32_26 dim 1 : vector<8x768xf32>, i32 -> vector<8x768xf32>
    %59 = tpu.concatenate %51, %52, %53, %54, %49, %55, %56, %57, %58 in 0 : vector<8x768xf32>, vector<8x768xf32>, vector<8x768xf32>, vector<8x768xf32>, vector<8x768xf32>, vector<8x768xf32>, vector<8x768xf32>, vector<8x768xf32>, vector<8x768xf32> -> vector<72x768xf32>
    %60 = arith.truncf %59 : vector<72x768xf32> to vector<72x768xbf16>
    %cst_27 = arith.constant dense<0.000000e+00> : vector<8x768xf32>
    %61 = tpu.matmul %50, %60, %cst_27 {dimension_numbers = #tpu.dot_dimension_numbers<[1], [0], [0], [1], [0, 0, 1, 1], [], []>} : vector<8x72xbf16>, vector<72x768xbf16>, vector<8x768xf32> -> vector<8x768xf32>
    %62 = vector.broadcast %0 : vector<1x768xf32> to vector<8x768xf32>
    %63 = arith.mulf %61, %62 : vector<8x768xf32>
    %cst_28 = arith.constant dense<0.000000e+00> : vector<8xf32>
    %64 = vector.multi_reduction <add>, %63, %cst_28 [1] : vector<8x768xf32> to vector<8xf32>
    %65 = vector.shape_cast %64 : vector<8xf32> to vector<8x1xf32>
    %cst_29 = arith.constant 0.001953125 : f32
    %66 = vector.broadcast %cst_29 : f32 to vector<8x1xf32>
    %67 = arith.mulf %65, %66 : vector<8x1xf32>
    %68 = arith.mulf %63, %61 : vector<8x768xf32>
    %cst_30 = arith.constant dense<0.000000e+00> : vector<8xf32>
    %69 = vector.multi_reduction <add>, %68, %cst_30 [1] : vector<8x768xf32> to vector<8xf32>
    %70 = vector.shape_cast %69 : vector<8xf32> to vector<8x1xf32>
    %cst_31 = arith.constant 0.001953125 : f32
    %71 = vector.broadcast %cst_31 : f32 to vector<8x1xf32>
    %72 = arith.mulf %70, %71 : vector<8x1xf32>
    %73 = arith.mulf %67, %67 : vector<8x1xf32>
    %74 = arith.subf %72, %73 : vector<8x1xf32>
    %cst_32 = arith.constant 9.99999974E-6 : f32
    %75 = vector.broadcast %cst_32 : f32 to vector<8x1xf32>
    %76 = arith.addf %74, %75 : vector<8x1xf32>
    %77 = math.rsqrt %76 : vector<8x1xf32>
    %78 = arith.mulf %5, %77 : vector<8x1xf32>
    %79 = vector.broadcast %67 : vector<8x1xf32> to vector<8x768xf32>
    %80 = arith.subf %61, %79 : vector<8x768xf32>
    %81 = vector.broadcast %78 : vector<8x1xf32> to vector<8x768xf32>
    %82 = arith.mulf %80, %81 : vector<8x768xf32>
    %83 = vector.broadcast %7 : vector<8x1xf32> to vector<8x768xf32>
    %84 = arith.addf %82, %83 : vector<8x768xf32>
    %cst_33 = arith.constant 0.000000e+00 : f32
    %85 = vector.broadcast %cst_33 : f32 to vector<8x768xf32>
    %86 = arith.cmpf oge, %84, %85 : vector<8x768xf32>
    %cst_34 = arith.constant 0.00999999977 : f32
    %87 = vector.broadcast %cst_34 : f32 to vector<8x768xf32>
    %88 = arith.mulf %87, %84 : vector<8x768xf32>
    %89 = arith.select %86, %84, %88 : vector<8x768xi1>, vector<8x768xf32>
    %90 = vector.broadcast %0 : vector<1x768xf32> to vector<8x768xf32>
    %91 = arith.mulf %89, %90 : vector<8x768xf32>
    %92 = arith.addf %1, %91 : vector<8x768xf32>
    %c1 = arith.constant 1 : index
    %c0_35 = arith.constant 0 : index
    %c0_36 = arith.constant 0 : index
    %93 = vector.load %arg2[%c1, %c0_35, %c0_36] : memref<2x8x72xf32, #tpu.memory_space<vmem>>, vector<1x8x72xf32>
    %94 = vector.shape_cast %93 : vector<1x8x72xf32> to vector<8x72xf32>
    %c1_37 = arith.constant 1 : index
    %c0_38 = arith.constant 0 : index
    %c0_39 = arith.constant 0 : index
    %95 = vector.load %arg3[%c1_37, %c0_38, %c0_39] : memref<2x8x1xf32, #tpu.memory_space<vmem>>, vector<1x8x1xf32>
    %96 = vector.shape_cast %95 : vector<1x8x1xf32> to vector<8x1xf32>
    %c1_40 = arith.constant 1 : index
    %c0_41 = arith.constant 0 : index
    %c0_42 = arith.constant 0 : index
    %97 = vector.load %arg4[%c1_40, %c0_41, %c0_42] : memref<2x8x1xf32, #tpu.memory_space<vmem>>, vector<1x8x1xf32>
    %98 = vector.shape_cast %97 : vector<1x8x1xf32> to vector<8x1xf32>
    %99 = arith.truncf %94 : vector<8x72xf32> to vector<8x72xbf16>
    %c19_i32_43 = arith.constant 19 : i32
    %100 = tpu.dynamic_rotate %92 by %c19_i32_43 dim 1 : vector<8x768xf32>, i32 -> vector<8x768xf32>
    %c18_i32_44 = arith.constant 18 : i32
    %101 = tpu.dynamic_rotate %92 by %c18_i32_44 dim 1 : vector<8x768xf32>, i32 -> vector<8x768xf32>
    %c17_i32_45 = arith.constant 17 : i32
    %102 = tpu.dynamic_rotate %92 by %c17_i32_45 dim 1 : vector<8x768xf32>, i32 -> vector<8x768xf32>
    %c1_i32_46 = arith.constant 1 : i32
    %103 = tpu.dynamic_rotate %92 by %c1_i32_46 dim 1 : vector<8x768xf32>, i32 -> vector<8x768xf32>
    %c767_i32_47 = arith.constant 767 : i32
    %104 = tpu.dynamic_rotate %92 by %c767_i32_47 dim 1 : vector<8x768xf32>, i32 -> vector<8x768xf32>
    %c751_i32_48 = arith.constant 751 : i32
    %105 = tpu.dynamic_rotate %92 by %c751_i32_48 dim 1 : vector<8x768xf32>, i32 -> vector<8x768xf32>
    %c750_i32_49 = arith.constant 750 : i32
    %106 = tpu.dynamic_rotate %92 by %c750_i32_49 dim 1 : vector<8x768xf32>, i32 -> vector<8x768xf32>
    %c749_i32_50 = arith.constant 749 : i32
    %107 = tpu.dynamic_rotate %92 by %c749_i32_50 dim 1 : vector<8x768xf32>, i32 -> vector<8x768xf32>
    %108 = tpu.concatenate %100, %101, %102, %103, %92, %104, %105, %106, %107 in 0 : vector<8x768xf32>, vector<8x768xf32>, vector<8x768xf32>, vector<8x768xf32>, vector<8x768xf32>, vector<8x768xf32>, vector<8x768xf32>, vector<8x768xf32>, vector<8x768xf32> -> vector<72x768xf32>
    %109 = arith.truncf %108 : vector<72x768xf32> to vector<72x768xbf16>
    %cst_51 = arith.constant dense<0.000000e+00> : vector<8x768xf32>
    %110 = tpu.matmul %99, %109, %cst_51 {dimension_numbers = #tpu.dot_dimension_numbers<[1], [0], [0], [1], [0, 0, 1, 1], [], []>} : vector<8x72xbf16>, vector<72x768xbf16>, vector<8x768xf32> -> vector<8x768xf32>
    %111 = vector.broadcast %0 : vector<1x768xf32> to vector<8x768xf32>
    %112 = arith.mulf %110, %111 : vector<8x768xf32>
    %cst_52 = arith.constant dense<0.000000e+00> : vector<8xf32>
    %113 = vector.multi_reduction <add>, %112, %cst_52 [1] : vector<8x768xf32> to vector<8xf32>
    %114 = vector.shape_cast %113 : vector<8xf32> to vector<8x1xf32>
    %cst_53 = arith.constant 0.001953125 : f32
    %115 = vector.broadcast %cst_53 : f32 to vector<8x1xf32>
    %116 = arith.mulf %114, %115 : vector<8x1xf32>
    %117 = arith.mulf %112, %110 : vector<8x768xf32>
    %cst_54 = arith.constant dense<0.000000e+00> : vector<8xf32>
    %118 = vector.multi_reduction <add>, %117, %cst_54 [1] : vector<8x768xf32> to vector<8xf32>
    %119 = vector.shape_cast %118 : vector<8xf32> to vector<8x1xf32>
    %cst_55 = arith.constant 0.001953125 : f32
    %120 = vector.broadcast %cst_55 : f32 to vector<8x1xf32>
    %121 = arith.mulf %119, %120 : vector<8x1xf32>
    %122 = arith.mulf %116, %116 : vector<8x1xf32>
    %123 = arith.subf %121, %122 : vector<8x1xf32>
    %cst_56 = arith.constant 9.99999974E-6 : f32
    %124 = vector.broadcast %cst_56 : f32 to vector<8x1xf32>
    %125 = arith.addf %123, %124 : vector<8x1xf32>
    %126 = math.rsqrt %125 : vector<8x1xf32>
    %127 = arith.mulf %96, %126 : vector<8x1xf32>
    %128 = vector.broadcast %116 : vector<8x1xf32> to vector<8x768xf32>
    %129 = arith.subf %110, %128 : vector<8x768xf32>
    %130 = vector.broadcast %127 : vector<8x1xf32> to vector<8x768xf32>
    %131 = arith.mulf %129, %130 : vector<8x768xf32>
    %132 = vector.broadcast %98 : vector<8x1xf32> to vector<8x768xf32>
    %133 = arith.addf %131, %132 : vector<8x768xf32>
    %cst_57 = arith.constant 0.000000e+00 : f32
    %134 = vector.broadcast %cst_57 : f32 to vector<8x768xf32>
    %135 = arith.cmpf oge, %133, %134 : vector<8x768xf32>
    %cst_58 = arith.constant 0.00999999977 : f32
    %136 = vector.broadcast %cst_58 : f32 to vector<8x768xf32>
    %137 = arith.mulf %136, %133 : vector<8x768xf32>
    %138 = arith.select %135, %133, %137 : vector<8x768xi1>, vector<8x768xf32>
    %139 = vector.broadcast %0 : vector<1x768xf32> to vector<8x768xf32>
    %140 = arith.mulf %138, %139 : vector<8x768xf32>
    %141 = arith.truncf %94 : vector<8x72xf32> to vector<8x72xbf16>
    %c19_i32_59 = arith.constant 19 : i32
    %142 = tpu.dynamic_rotate %140 by %c19_i32_59 dim 1 : vector<8x768xf32>, i32 -> vector<8x768xf32>
    %c18_i32_60 = arith.constant 18 : i32
    %143 = tpu.dynamic_rotate %140 by %c18_i32_60 dim 1 : vector<8x768xf32>, i32 -> vector<8x768xf32>
    %c17_i32_61 = arith.constant 17 : i32
    %144 = tpu.dynamic_rotate %140 by %c17_i32_61 dim 1 : vector<8x768xf32>, i32 -> vector<8x768xf32>
    %c1_i32_62 = arith.constant 1 : i32
    %145 = tpu.dynamic_rotate %140 by %c1_i32_62 dim 1 : vector<8x768xf32>, i32 -> vector<8x768xf32>
    %c767_i32_63 = arith.constant 767 : i32
    %146 = tpu.dynamic_rotate %140 by %c767_i32_63 dim 1 : vector<8x768xf32>, i32 -> vector<8x768xf32>
    %c751_i32_64 = arith.constant 751 : i32
    %147 = tpu.dynamic_rotate %140 by %c751_i32_64 dim 1 : vector<8x768xf32>, i32 -> vector<8x768xf32>
    %c750_i32_65 = arith.constant 750 : i32
    %148 = tpu.dynamic_rotate %140 by %c750_i32_65 dim 1 : vector<8x768xf32>, i32 -> vector<8x768xf32>
    %c749_i32_66 = arith.constant 749 : i32
    %149 = tpu.dynamic_rotate %140 by %c749_i32_66 dim 1 : vector<8x768xf32>, i32 -> vector<8x768xf32>
    %150 = tpu.concatenate %142, %143, %144, %145, %140, %146, %147, %148, %149 in 0 : vector<8x768xf32>, vector<8x768xf32>, vector<8x768xf32>, vector<8x768xf32>, vector<8x768xf32>, vector<8x768xf32>, vector<8x768xf32>, vector<8x768xf32>, vector<8x768xf32> -> vector<72x768xf32>
    %151 = arith.truncf %150 : vector<72x768xf32> to vector<72x768xbf16>
    %cst_67 = arith.constant dense<0.000000e+00> : vector<8x768xf32>
    %152 = tpu.matmul %141, %151, %cst_67 {dimension_numbers = #tpu.dot_dimension_numbers<[1], [0], [0], [1], [0, 0, 1, 1], [], []>} : vector<8x72xbf16>, vector<72x768xbf16>, vector<8x768xf32> -> vector<8x768xf32>
    %153 = vector.broadcast %0 : vector<1x768xf32> to vector<8x768xf32>
    %154 = arith.mulf %152, %153 : vector<8x768xf32>
    %cst_68 = arith.constant dense<0.000000e+00> : vector<8xf32>
    %155 = vector.multi_reduction <add>, %154, %cst_68 [1] : vector<8x768xf32> to vector<8xf32>
    %156 = vector.shape_cast %155 : vector<8xf32> to vector<8x1xf32>
    %cst_69 = arith.constant 0.001953125 : f32
    %157 = vector.broadcast %cst_69 : f32 to vector<8x1xf32>
    %158 = arith.mulf %156, %157 : vector<8x1xf32>
    %159 = arith.mulf %154, %152 : vector<8x768xf32>
    %cst_70 = arith.constant dense<0.000000e+00> : vector<8xf32>
    %160 = vector.multi_reduction <add>, %159, %cst_70 [1] : vector<8x768xf32> to vector<8xf32>
    %161 = vector.shape_cast %160 : vector<8xf32> to vector<8x1xf32>
    %cst_71 = arith.constant 0.001953125 : f32
    %162 = vector.broadcast %cst_71 : f32 to vector<8x1xf32>
    %163 = arith.mulf %161, %162 : vector<8x1xf32>
    %164 = arith.mulf %158, %158 : vector<8x1xf32>
    %165 = arith.subf %163, %164 : vector<8x1xf32>
    %cst_72 = arith.constant 9.99999974E-6 : f32
    %166 = vector.broadcast %cst_72 : f32 to vector<8x1xf32>
    %167 = arith.addf %165, %166 : vector<8x1xf32>
    %168 = math.rsqrt %167 : vector<8x1xf32>
    %169 = arith.mulf %96, %168 : vector<8x1xf32>
    %170 = vector.broadcast %158 : vector<8x1xf32> to vector<8x768xf32>
    %171 = arith.subf %152, %170 : vector<8x768xf32>
    %172 = vector.broadcast %169 : vector<8x1xf32> to vector<8x768xf32>
    %173 = arith.mulf %171, %172 : vector<8x768xf32>
    %174 = vector.broadcast %98 : vector<8x1xf32> to vector<8x768xf32>
    %175 = arith.addf %173, %174 : vector<8x768xf32>
    %cst_73 = arith.constant 0.000000e+00 : f32
    %176 = vector.broadcast %cst_73 : f32 to vector<8x768xf32>
    %177 = arith.cmpf oge, %175, %176 : vector<8x768xf32>
    %cst_74 = arith.constant 0.00999999977 : f32
    %178 = vector.broadcast %cst_74 : f32 to vector<8x768xf32>
    %179 = arith.mulf %178, %175 : vector<8x768xf32>
    %180 = arith.select %177, %175, %179 : vector<8x768xi1>, vector<8x768xf32>
    %181 = vector.broadcast %0 : vector<1x768xf32> to vector<8x768xf32>
    %182 = arith.mulf %180, %181 : vector<8x768xf32>
    %183 = arith.addf %92, %182 : vector<8x768xf32>
    %c0_75 = arith.constant 0 : index
    %c0_76 = arith.constant 0 : index
    %184 = vector.load %arg5[%c0_75, %c0_76] : memref<8x72xf32, #tpu.memory_space<vmem>>, vector<8x72xf32>
    %185 = arith.truncf %184 : vector<8x72xf32> to vector<8x72xbf16>
    %c19_i32_77 = arith.constant 19 : i32
    %186 = tpu.dynamic_rotate %183 by %c19_i32_77 dim 1 : vector<8x768xf32>, i32 -> vector<8x768xf32>
    %c18_i32_78 = arith.constant 18 : i32
    %187 = tpu.dynamic_rotate %183 by %c18_i32_78 dim 1 : vector<8x768xf32>, i32 -> vector<8x768xf32>
    %c17_i32_79 = arith.constant 17 : i32
    %188 = tpu.dynamic_rotate %183 by %c17_i32_79 dim 1 : vector<8x768xf32>, i32 -> vector<8x768xf32>
    %c1_i32_80 = arith.constant 1 : i32
    %189 = tpu.dynamic_rotate %183 by %c1_i32_80 dim 1 : vector<8x768xf32>, i32 -> vector<8x768xf32>
    %c767_i32_81 = arith.constant 767 : i32
    %190 = tpu.dynamic_rotate %183 by %c767_i32_81 dim 1 : vector<8x768xf32>, i32 -> vector<8x768xf32>
    %c751_i32_82 = arith.constant 751 : i32
    %191 = tpu.dynamic_rotate %183 by %c751_i32_82 dim 1 : vector<8x768xf32>, i32 -> vector<8x768xf32>
    %c750_i32_83 = arith.constant 750 : i32
    %192 = tpu.dynamic_rotate %183 by %c750_i32_83 dim 1 : vector<8x768xf32>, i32 -> vector<8x768xf32>
    %c749_i32_84 = arith.constant 749 : i32
    %193 = tpu.dynamic_rotate %183 by %c749_i32_84 dim 1 : vector<8x768xf32>, i32 -> vector<8x768xf32>
    %194 = tpu.concatenate %186, %187, %188, %189, %183, %190, %191, %192, %193 in 0 : vector<8x768xf32>, vector<8x768xf32>, vector<8x768xf32>, vector<8x768xf32>, vector<8x768xf32>, vector<8x768xf32>, vector<8x768xf32>, vector<8x768xf32>, vector<8x768xf32> -> vector<72x768xf32>
    %195 = arith.truncf %194 : vector<72x768xf32> to vector<72x768xbf16>
    %cst_85 = arith.constant dense<0.000000e+00> : vector<8x768xf32>
    %196 = tpu.matmul %185, %195, %cst_85 {dimension_numbers = #tpu.dot_dimension_numbers<[1], [0], [0], [1], [0, 0, 1, 1], [], []>} : vector<8x72xbf16>, vector<72x768xbf16>, vector<8x768xf32> -> vector<8x768xf32>
    %c0_86 = arith.constant 0 : index
    %c0_87 = arith.constant 0 : index
    %197 = vector.load %arg6[%c0_86, %c0_87] : memref<8x1xf32, #tpu.memory_space<vmem>>, vector<8x1xf32>
    %c0_88 = arith.constant 0 : index
    %c0_89 = arith.constant 0 : index
    %198 = vector.load %arg7[%c0_88, %c0_89] : memref<8x1xf32, #tpu.memory_space<vmem>>, vector<8x1xf32>
    %c0_90 = arith.constant 0 : index
    %c0_91 = arith.constant 0 : index
    %199 = vector.load %arg9[%c0_90, %c0_91] : memref<1x768xf32, #tpu.memory_space<vmem>>, vector<1x768xf32>
    %200 = vector.broadcast %199 : vector<1x768xf32> to vector<8x768xf32>
    %201 = arith.mulf %196, %200 : vector<8x768xf32>
    %cst_92 = arith.constant dense<0.000000e+00> : vector<8xf32>
    %202 = vector.multi_reduction <add>, %201, %cst_92 [1] : vector<8x768xf32> to vector<8xf32>
    %203 = vector.shape_cast %202 : vector<8xf32> to vector<8x1xf32>
    %cst_93 = arith.constant 7.812500e-03 : f32
    %204 = vector.broadcast %cst_93 : f32 to vector<8x1xf32>
    %205 = arith.mulf %203, %204 : vector<8x1xf32>
    %206 = arith.mulf %201, %196 : vector<8x768xf32>
    %cst_94 = arith.constant dense<0.000000e+00> : vector<8xf32>
    %207 = vector.multi_reduction <add>, %206, %cst_94 [1] : vector<8x768xf32> to vector<8xf32>
    %208 = vector.shape_cast %207 : vector<8xf32> to vector<8x1xf32>
    %cst_95 = arith.constant 7.812500e-03 : f32
    %209 = vector.broadcast %cst_95 : f32 to vector<8x1xf32>
    %210 = arith.mulf %208, %209 : vector<8x1xf32>
    %211 = arith.mulf %205, %205 : vector<8x1xf32>
    %212 = arith.subf %210, %211 : vector<8x1xf32>
    %cst_96 = arith.constant 9.99999974E-6 : f32
    %213 = vector.broadcast %cst_96 : f32 to vector<8x1xf32>
    %214 = arith.addf %212, %213 : vector<8x1xf32>
    %215 = math.rsqrt %214 : vector<8x1xf32>
    %216 = arith.mulf %197, %215 : vector<8x1xf32>
    %217 = vector.broadcast %205 : vector<8x1xf32> to vector<8x768xf32>
    %218 = arith.subf %196, %217 : vector<8x768xf32>
    %219 = vector.broadcast %216 : vector<8x1xf32> to vector<8x768xf32>
    %220 = arith.mulf %218, %219 : vector<8x768xf32>
    %221 = vector.broadcast %198 : vector<8x1xf32> to vector<8x768xf32>
    %222 = arith.addf %220, %221 : vector<8x768xf32>
    %cst_97 = arith.constant 0.000000e+00 : f32
    %223 = vector.broadcast %cst_97 : f32 to vector<8x768xf32>
    %224 = arith.cmpf oge, %222, %223 : vector<8x768xf32>
    %cst_98 = arith.constant 0.00999999977 : f32
    %225 = vector.broadcast %cst_98 : f32 to vector<8x768xf32>
    %226 = arith.mulf %225, %222 : vector<8x768xf32>
    %227 = arith.select %224, %222, %226 : vector<8x768xi1>, vector<8x768xf32>
    %c0_99 = arith.constant 0 : index
    %c0_100 = arith.constant 0 : index
    %228 = vector.load %arg10[%c0_99, %c0_100] : memref<8x768xf32, #tpu.memory_space<vmem>>, vector<8x768xf32>
    tpu.vector_store %arg10[%c0_99, %c0_100], %227 {strides = array<i32>} : memref<8x768xf32, #tpu.memory_space<vmem>>, vector<8x768xf32>,
    return
  }
  func.func @transform_0(%arg0: i32) -> (i32, i32) {
    %c0_i32 = arith.constant 0 : i32
    %c0_i32_0 = arith.constant 0 : i32
    %c0_i32_1 = arith.constant 0 : i32
    return %c0_i32, %c0_i32_0 : i32, i32
  }
  func.func @transform_1(%arg0: i32) -> (i32, i32, i32) {
    %c0_i32 = arith.constant 0 : i32
    %c0_i32_0 = arith.constant 0 : i32
    %c0_i32_1 = arith.constant 0 : i32
    %c0_i32_2 = arith.constant 0 : i32
    return %c0_i32, %c0_i32_0, %c0_i32_1 : i32, i32, i32
  }
  func.func @transform_2(%arg0: i32) -> (i32, i32, i32) {
    %c0_i32 = arith.constant 0 : i32
    %c0_i32_0 = arith.constant 0 : i32
    %c0_i32_1 = arith.constant 0 : i32
    %c0_i32_2 = arith.constant 0 : i32
    return %c0_i32, %c0_i32_0, %c0_i32_1 : i32, i32, i32
  }
  func.func @transform_3(%arg0: i32) -> (i32, i32, i32) {
    %c0_i32 = arith.constant 0 : i32
    %c0_i32_0 = arith.constant 0 : i32
    %c0_i32_1 = arith.constant 0 : i32
    %c0_i32_2 = arith.constant 0 : i32
    return %c0_i32, %c0_i32_0, %c0_i32_1 : i32, i32, i32
  }
  func.func @transform_4(%arg0: i32) -> (i32, i32) {
    %c0_i32 = arith.constant 0 : i32
    %c0_i32_0 = arith.constant 0 : i32
    %c0_i32_1 = arith.constant 0 : i32
    return %c0_i32, %c0_i32_0 : i32, i32
  }
  func.func @transform_5(%arg0: i32) -> (i32, i32) {
    %c0_i32 = arith.constant 0 : i32
    %c0_i32_0 = arith.constant 0 : i32
    %c0_i32_1 = arith.constant 0 : i32
    return %c0_i32, %c0_i32_0 : i32, i32
  }
  func.func @transform_6(%arg0: i32) -> (i32, i32) {
    %c0_i32 = arith.constant 0 : i32
    %c0_i32_0 = arith.constant 0 : i32
    %c0_i32_1 = arith.constant 0 : i32
    return %c0_i32, %c0_i32_0 : i32, i32
  }
  func.func @transform_7(%arg0: i32) -> (i32, i32) {
    %c0_i32 = arith.constant 0 : i32
    %c0_i32_0 = arith.constant 0 : i32
    %c0_i32_1 = arith.constant 0 : i32
    return %c0_i32, %c0_i32_0 : i32, i32
  }
  func.func @transform_8(%arg0: i32) -> (i32, i32) {
    %c0_i32 = arith.constant 0 : i32
    %c0_i32_0 = arith.constant 0 : i32
    %c0_i32_1 = arith.constant 0 : i32
    return %c0_i32, %c0_i32_0 : i32, i32
  }
  func.func @transform_9(%arg0: i32) -> (i32, i32) {
    %c0_i32 = arith.constant 0 : i32
    %c0_i32_0 = arith.constant 0 : i32
    %c0_i32_1 = arith.constant 0 : i32
    return %c0_i32, %c0_i32_0 : i32, i32
  }
}

</mosaic_0001>

<llo_original>
// kernel: res_block_forward.1
$region0: #{res_block_forward.1}
  #allocation0 [shape = 'u32[]', space=smem, size = 0x4, offset = 0x4, fixed_abs, tag = 'smem constant byte address 0x4 - core index']
  #allocation1 [shape = 'u32[144,128]{1,0:T(1,128)}', space=vmem, size = 0x12000, scoped, tag = 'internal scratch']
  %s0 = inlined_call_operand.vmem [shape: f32[8,768], index: 0, kind: input, shape index: {}]
  %s1 = inlined_call_operand.vmem [shape: f32[2,8,72], index: 1, kind: input, shape index: {}]
  %s2 = inlined_call_operand.vmem [shape: f32[2,8,1], index: 2, kind: input, shape index: {}]
  %s3 = inlined_call_operand.vmem [shape: f32[2,8,1], index: 3, kind: input, shape index: {}]
  %s4 = inlined_call_operand.vmem [shape: f32[8,72], index: 4, kind: input, shape index: {}]
  %s5 = inlined_call_operand.vmem [shape: f32[8,1], index: 5, kind: input, shape index: {}]
  %s6 = inlined_call_operand.vmem [shape: f32[8,1], index: 6, kind: input, shape index: {}]
  %s7 = inlined_call_operand.vmem [shape: f32[1,768], index: 7, kind: input, shape index: {}]
  %s8 = inlined_call_operand.vmem [shape: f32[1,768], index: 8, kind: input, shape index: {}]
  %s9 = inlined_call_operand.vmem [shape: f32[8,768], index: 9, kind: output, shape index: {}]
  %s10 = sld [smem:[#allocation0]]
  $region46: #{res_block_forward.1} parent=0
    _
  %s12 = ssub.s32 1, %s10
  %s13 = scalar_select 0, %s12, %s10
  // Predicated region
  $region2: #{res_block_forward.1} parent=0 // pred_check
    _
  $region3: #{res_block_forward.1} parent=0 // pred_check_branch
    %15 = sbr.rel (0) target = $region5
  $region4: #{res_block_forward.1} parent=0 // pred_region
    _
  $region5: #{res_block_forward.1} parent=0 // pred_fallthru
    _
  // Predicated region
  $region6: #{res_block_forward.1} parent=0 // pred_check
    _
  $region7: #{res_block_forward.1} parent=0 // pred_check_branch
    %17 = sbr.rel (0) target = $region9
  $region8: #{res_block_forward.1} parent=0 // pred_region
    _
  $region9: #{res_block_forward.1} parent=0 // pred_fallthru
    _
  // Predicated region
  $region10: #{res_block_forward.1} parent=0 // pred_check
    _
  $region11: #{res_block_forward.1} parent=0 // pred_check_branch
    %19 = sbr.rel (0) target = $region13
  $region12: #{res_block_forward.1} parent=0 // pred_region
    _
  $region13: #{res_block_forward.1} parent=0 // pred_fallthru
    _
  // Predicated region
  $region14: #{res_block_forward.1} parent=0 // pred_check
    _
  $region15: #{res_block_forward.1} parent=0 // pred_check_branch
    %21 = sbr.rel (0) target = $region17
  $region16: #{res_block_forward.1} parent=0 // pred_region
    _
  $region17: #{res_block_forward.1} parent=0 // pred_fallthru
    _
  // Predicated region
  $region18: #{res_block_forward.1} parent=0 // pred_check
    _
  $region19: #{res_block_forward.1} parent=0 // pred_check_branch
    %23 = sbr.rel (0) target = $region21
  $region20: #{res_block_forward.1} parent=0 // pred_region
    _
  $region21: #{res_block_forward.1} parent=0 // pred_fallthru
    _
  // Predicated region
  $region22: #{res_block_forward.1} parent=0 // pred_check
    _
  $region23: #{res_block_forward.1} parent=0 // pred_check_branch
    %25 = sbr.rel (0) target = $region25
  $region24: #{res_block_forward.1} parent=0 // pred_region
    _
  $region25: #{res_block_forward.1} parent=0 // pred_fallthru
    _
  // Predicated region
  $region26: #{res_block_forward.1} parent=0 // pred_check
    _
  $region27: #{res_block_forward.1} parent=0 // pred_check_branch
    %27 = sbr.rel (0) target = $region29
  $region28: #{res_block_forward.1} parent=0 // pred_region
    _
  $region29: #{res_block_forward.1} parent=0 // pred_fallthru
    _
  // Predicated region
  $region30: #{res_block_forward.1} parent=0 // pred_check
    _
  $region31: #{res_block_forward.1} parent=0 // pred_check_branch
    %29 = sbr.rel (0) target = $region33
  $region32: #{res_block_forward.1} parent=0 // pred_region
    _
  $region33: #{res_block_forward.1} parent=0 // pred_fallthru
    _
  // Predicated region
  $region34: #{res_block_forward.1} parent=0 // pred_check
    _
  $region35: #{res_block_forward.1} parent=0 // pred_check_branch
    %31 = sbr.rel (0) target = $region37
  $region36: #{res_block_forward.1} parent=0 // pred_region
    _
  $region37: #{res_block_forward.1} parent=0 // pred_fallthru
    _
  %v33 = vld [vmem:[%s7] sm:$0x3f]
  %v34 = vld [vmem:[%s0] sm:$0xff]
  %v35 = vld [vmem:[%s0 + $0x8] sm:$0xff]
  %v36 = vld [vmem:[%s0 + $0x10] sm:$0xff]
  %v37 = vld [vmem:[%s0 + $0x18] sm:$0xff]
  %v38 = vld [vmem:[%s0 + $0x20] sm:$0xff]
  %v39 = vld [vmem:[%s0 + $0x28] sm:$0xff]
  %v40 = vld [vmem:[%s1] sm:$0xff]
  %v41 = vld [vmem:[%s2] sm:$0xff]
  %v42 = vld [vmem:[%s3] sm:$0xff]
  %v43 = vpack.c.bf16 %v40, %v40
  %44 = vrot.lane.b32.xlu0 %v34, 19
  %v45 = vpop.permute.xlu0 %44
  %46 = vrot.lane.b32.xlu0 %v35, 19
  %v47 = vpop.permute.xlu0 %46
  %48 = vrot.lane.b32.xlu0 %v36, 19
  %v49 = vpop.permute.xlu0 %48
  %50 = vrot.lane.b32.xlu0 %v37, 19
  %v51 = vpop.permute.xlu0 %50
  %52 = vrot.lane.b32.xlu0 %v38, 19
  %v53 = vpop.permute.xlu0 %52
  %54 = vrot.lane.b32.xlu0 %v39, 19
  %v55 = vpop.permute.xlu0 %54
  %v56 = vlaneseq
  %v57 = vand.u32 %v56, 127
  %vm58 = vcmp.lt.s32.totalorder %v57, 19
  %v59 = vsel %vm58, %v53, %v55
  %v60 = vsel %vm58, %v51, %v53
  %v61 = vsel %vm58, %v49, %v51
  %v62 = vsel %vm58, %v47, %v49
  %v63 = vsel %vm58, %v45, %v47
  %v64 = vsel %vm58, %v55, %v45
  %65 = vrot.lane.b32.xlu0 %v34, 18
  %v66 = vpop.permute.xlu0 %65
  %67 = vrot.lane.b32.xlu0 %v35, 18
  %v68 = vpop.permute.xlu0 %67
  %69 = vrot.lane.b32.xlu0 %v36, 18
  %v70 = vpop.permute.xlu0 %69
  %71 = vrot.lane.b32.xlu0 %v37, 18
  %v72 = vpop.permute.xlu0 %71
  %73 = vrot.lane.b32.xlu0 %v38, 18
  %v74 = vpop.permute.xlu0 %73
  %75 = vrot.lane.b32.xlu0 %v39, 18
  %v76 = vpop.permute.xlu0 %75
  %vm77 = vcmp.lt.s32.totalorder %v57, 18
  %v78 = vsel %vm77, %v74, %v76
  %v79 = vsel %vm77, %v72, %v74
  %v80 = vsel %vm77, %v70, %v72
  %v81 = vsel %vm77, %v68, %v70
  %v82 = vsel %vm77, %v66, %v68
  %v83 = vsel %vm77, %v76, %v66
  %84 = vrot.lane.b32.xlu0 %v34, 17
  %v85 = vpop.permute.xlu0 %84
  %86 = vrot.lane.b32.xlu0 %v35, 17
  %v87 = vpop.permute.xlu0 %86
  %88 = vrot.lane.b32.xlu0 %v36, 17
  %v89 = vpop.permute.xlu0 %88
  %90 = vrot.lane.b32.xlu0 %v37, 17
  %v91 = vpop.permute.xlu0 %90
  %92 = vrot.lane.b32.xlu0 %v38, 17
  %v93 = vpop.permute.xlu0 %92
  %94 = vrot.lane.b32.xlu0 %v39, 17
  %v95 = vpop.permute.xlu0 %94
  %vm96 = vcmp.lt.s32.totalorder %v57, 17
  %v97 = vsel %vm96, %v93, %v95
  %v98 = vsel %vm96, %v91, %v93
  %v99 = vsel %vm96, %v89, %v91
  %v100 = vsel %vm96, %v87, %v89
  %v101 = vsel %vm96, %v85, %v87
  %v102 = vsel %vm96, %v95, %v85
  %103 = vrot.lane.b32.xlu0 %v34, 1
  %v104 = vpop.permute.xlu0 %103
  %105 = vrot.lane.b32.xlu0 %v35, 1
  %v106 = vpop.permute.xlu0 %105
  %107 = vrot.lane.b32.xlu0 %v36, 1
  %v108 = vpop.permute.xlu0 %107
  %109 = vrot.lane.b32.xlu0 %v37, 1
  %v110 = vpop.permute.xlu0 %109
  %111 = vrot.lane.b32.xlu0 %v38, 1
  %v112 = vpop.permute.xlu0 %111
  %113 = vrot.lane.b32.xlu0 %v39, 1
  %v114 = vpop.permute.xlu0 %113
  %vm115 = vcmp.lt.s32.totalorder %v57, 1
  %v116 = vsel %vm115, %v112, %v114
  %v117 = vsel %vm115, %v110, %v112
  %v118 = vsel %vm115, %v108, %v110
  %v119 = vsel %vm115, %v106, %v108
  %v120 = vsel %vm115, %v104, %v106
  %v121 = vsel %vm115, %v114, %v104
  %122 = vrot.lane.b32.xlu0 %v34, 127
  %v123 = vpop.permute.xlu0 %122
  %124 = vrot.lane.b32.xlu0 %v35, 127
  %v125 = vpop.permute.xlu0 %124
  %126 = vrot.lane.b32.xlu0 %v36, 127
  %v127 = vpop.permute.xlu0 %126
  %128 = vrot.lane.b32.xlu0 %v37, 127
  %v129 = vpop.permute.xlu0 %128
  %130 = vrot.lane.b32.xlu0 %v38, 127
  %v131 = vpop.permute.xlu0 %130
  %132 = vrot.lane.b32.xlu0 %v39, 127
  %v133 = vpop.permute.xlu0 %132
  %vm134 = vcmp.lt.s32.totalorder %v57, 127
  %v135 = vsel %vm134, %v131, %v133
  %v136 = vsel %vm134, %v129, %v131
  %v137 = vsel %vm134, %v127, %v129
  %v138 = vsel %vm134, %v125, %v127
  %v139 = vsel %vm134, %v123, %v125
  %v140 = vsel %vm134, %v133, %v123
  %141 = vrot.lane.b32.xlu0 %v34, 111
  %v142 = vpop.permute.xlu0 %141
  %143 = vrot.lane.b32.xlu0 %v35, 111
  %v144 = vpop.permute.xlu0 %143
  %145 = vrot.lane.b32.xlu0 %v36, 111
  %v146 = vpop.permute.xlu0 %145
  %147 = vrot.lane.b32.xlu0 %v37, 111
  %v148 = vpop.permute.xlu0 %147
  %149 = vrot.lane.b32.xlu0 %v38, 111
  %v150 = vpop.permute.xlu0 %149
  %151 = vrot.lane.b32.xlu0 %v39, 111
  %v152 = vpop.permute.xlu0 %151
  %vm153 = vcmp.lt.s32.totalorder %v57, 111
  %v154 = vsel %vm153, %v150, %v152
  %v155 = vsel %vm153, %v148, %v150
  %v156 = vsel %vm153, %v146, %v148
  %v157 = vsel %vm153, %v144, %v146
  %v158 = vsel %vm153, %v142, %v144
  %v159 = vsel %vm153, %v152, %v142
  %160 = vrot.lane.b32.xlu0 %v34, 110
  %v161 = vpop.permute.xlu0 %160
  %162 = vrot.lane.b32.xlu0 %v35, 110
  %v163 = vpop.permute.xlu0 %162
  %164 = vrot.lane.b32.xlu0 %v36, 110
  %v165 = vpop.permute.xlu0 %164
  %166 = vrot.lane.b32.xlu0 %v37, 110
  %v167 = vpop.permute.xlu0 %166
  %168 = vrot.lane.b32.xlu0 %v38, 110
  %v169 = vpop.permute.xlu0 %168
  %170 = vrot.lane.b32.xlu0 %v39, 110
  %v171 = vpop.permute.xlu0 %170
  %vm172 = vcmp.lt.s32.totalorder %v57, 110
  %v173 = vsel %vm172, %v169, %v171
  %v174 = vsel %vm172, %v167, %v169
  %v175 = vsel %vm172, %v165, %v167
  %v176 = vsel %vm172, %v163, %v165
  %v177 = vsel %vm172, %v161, %v163
  %v178 = vsel %vm172, %v171, %v161
  %179 = vrot.lane.b32.xlu0 %v34, 109
  %v180 = vpop.permute.xlu0 %179
  %181 = vrot.lane.b32.xlu0 %v35, 109
  %v182 = vpop.permute.xlu0 %181
  %183 = vrot.lane.b32.xlu0 %v36, 109
  %v184 = vpop.permute.xlu0 %183
  %185 = vrot.lane.b32.xlu0 %v37, 109
  %v186 = vpop.permute.xlu0 %185
  %187 = vrot.lane.b32.xlu0 %v38, 109
  %v188 = vpop.permute.xlu0 %187
  %189 = vrot.lane.b32.xlu0 %v39, 109
  %v190 = vpop.permute.xlu0 %189
  %vm191 = vcmp.lt.s32.totalorder %v57, 109
  %v192 = vsel %vm191, %v188, %v190
  %v193 = vsel %vm191, %v186, %v188
  %v194 = vsel %vm191, %v184, %v186
  %v195 = vsel %vm191, %v182, %v184
  %v196 = vsel %vm191, %v180, %v182
  %v197 = vsel %vm191, %v190, %v180
  %v198 = vpack.c.bf16 %v83, %v64
  %v199 = vpack.c.bf16 %v82, %v63
  %v200 = vpack.c.bf16 %v81, %v62
  %v201 = vpack.c.bf16 %v80, %v61
  %v202 = vpack.c.bf16 %v79, %v60
  %v203 = vpack.c.bf16 %v78, %v59
  %v204 = vpack.c.bf16 %v121, %v102
  %v205 = vpack.c.bf16 %v120, %v101
  %v206 = vpack.c.bf16 %v119, %v100
  %v207 = vpack.c.bf16 %v118, %v99
  %v208 = vpack.c.bf16 %v117, %v98
  %v209 = vpack.c.bf16 %v116, %v97
  %v210 = vpack.c.bf16 %v139, %v34
  %v211 = vpack.c.bf16 %v138, %v35
  %v212 = vpack.c.bf16 %v137, %v36
  %v213 = vpack.c.bf16 %v136, %v37
  %v214 = vpack.c.bf16 %v135, %v38
  %v215 = vpack.c.bf16 %v140, %v39
  %v216 = vpack.c.bf16 %v177, %v158
  %v217 = vpack.c.bf16 %v176, %v157
  %v218 = vpack.c.bf16 %v175, %v156
  %v219 = vpack.c.bf16 %v174, %v155
  %v220 = vpack.c.bf16 %v173, %v154
  %v221 = vpack.c.bf16 %v178, %v159
  %v222 = vpack.c.bf16 %v196, %v196
  %v223 = vpack.c.bf16 %v195, %v195
  %v224 = vpack.c.bf16 %v194, %v194
  %v225 = vpack.c.bf16 %v193, %v193
  %v226 = vpack.c.bf16 %v192, %v192
  %v227 = vpack.c.bf16 %v197, %v197
  %vm228 = vcmask 588800
  %v230 = vsel %vm228, %v43, 0
  %vm232 = vcmask 1043456
  %v234 = vsel %vm232, %v222, 0
  %v237 = vsel %vm232, %v223, 0
  %v240 = vsel %vm232, %v224, 0
  %v243 = vsel %vm232, %v225, 0
  %v246 = vsel %vm232, %v226, 0
  %v249 = vsel %vm232, %v227, 0
  %251 = vmatprep.subr.bf16.mxu0 %v199
  %252 = vmatpush1.bf16.msra.mxu0 %v198
  %253 = vmatprep.subr.bf16.mxu0 %v205
  %254 = vmatpush1.bf16.msra.mxu0 %v204
  %255 = vmatprep.subr.bf16.mxu0 %v211
  %256 = vmatpush1.bf16.msra.mxu0 %v210
  %257 = vmatprep.subr.bf16.mxu0 %v217
  %258 = vmatpush1.bf16.msra.mxu0 %v216
  %259 = vmatprep.subr.bf16.mxu0 %v237
  %260 = vmatpush1.bf16.msra.mxu0 %v234
  %261 = vmatprep.subr.bf16.mxu0 0
  %262 = vmatpush1.bf16.msra.mxu0 0
  %263 = vmatprep.subr.bf16.mxu0 0
  %264 = vmatpush1.bf16.msra.mxu0 0
  %265 = vmatprep.subr.bf16.mxu0 0
  %266 = vmatpush1.bf16.msra.mxu0 0
  %267 = vmatprep.subr.bf16.mxu0 0
  %268 = vmatpush1.bf16.msra.mxu0 0
  %269 = vmatprep.subr.bf16.mxu0 0
  %270 = vmatpush1.bf16.msra.mxu0 0
  %271 = vmatprep.subr.bf16.mxu0 0
  %272 = vmatpush1.bf16.msra.mxu0 0
  %273 = vmatprep.subr.bf16.mxu0 0
  %274 = vmatpush1.bf16.msra.mxu0 0
  %275 = vmatprep.subr.bf16.mxu0 0
  %276 = vmatpush1.bf16.msra.mxu0 0
  %277 = vmatprep.subr.bf16.mxu0 0
  %278 = vmatpush1.bf16.msra.mxu0 0
  %279 = vmatprep.subr.bf16.mxu0 0
  %280 = vmatpush1.bf16.msra.mxu0 0
  %281 = vmatprep.subr.bf16.mxu0 0
  %282 = vmatpush1.bf16.msra.mxu0 0
  %283 = vmatprep.mubr.bf16.mxu0 0
  %284 = vmatmul.mubr.bf16.gmra.mrb[0].mxu0 %v230
  %v285 = vpop.f32.mrb[0].mxu0
  %v286 = vadd.f32 0.0, %v285
  %v287 = vpop.f32.mrb[0].mxu0
  %v288 = vadd.f32 0.0, %v287
  %v289 = vpop.f32.mrb[0].mxu0
  %v290 = vpop.f32.mrb[0].mxu0
  %291 = vdwg.mxu0
  %292 = vmatprep.subr.bf16.mxu0 %v201
  %293 = vmatpush1.bf16.msra.mxu0 %v200
  %294 = vmatprep.subr.bf16.mxu0 %v207
  %295 = vmatpush1.bf16.msra.mxu0 %v206
  %296 = vmatprep.subr.bf16.mxu0 %v213
  %297 = vmatpush1.bf16.msra.mxu0 %v212
  %298 = vmatprep.subr.bf16.mxu0 %v219
  %299 = vmatpush1.bf16.msra.mxu0 %v218
  %300 = vmatprep.subr.bf16.mxu0 %v243
  %301 = vmatpush1.bf16.msra.mxu0 %v240
  %302 = vmatprep.subr.bf16.mxu0 0
  %303 = vmatpush1.bf16.msra.mxu0 0
  %304 = vmatprep.subr.bf16.mxu0 0
  %305 = vmatpush1.bf16.msra.mxu0 0
  %306 = vmatprep.subr.bf16.mxu0 0
  %307 = vmatpush1.bf16.msra.mxu0 0
  %308 = vmatprep.subr.bf16.mxu0 0
  %309 = vmatpush1.bf16.msra.mxu0 0
  %310 = vmatprep.subr.bf16.mxu0 0
  %311 = vmatpush1.bf16.msra.mxu0 0
  %312 = vmatprep.subr.bf16.mxu0 0
  %313 = vmatpush1.bf16.msra.mxu0 0
  %314 = vmatprep.subr.bf16.mxu0 0
  %315 = vmatpush1.bf16.msra.mxu0 0
  %316 = vmatprep.subr.bf16.mxu0 0
  %317 = vmatpush1.bf16.msra.mxu0 0
  %318 = vmatprep.subr.bf16.mxu0 0
  %319 = vmatpush1.bf16.msra.mxu0 0
  %320 = vmatprep.subr.bf16.mxu0 0
  %321 = vmatpush1.bf16.msra.mxu0 0
  %322 = vmatprep.subr.bf16.mxu0 0
  %323 = vmatpush1.bf16.msra.mxu0 0
  %324 = vmatprep.mubr.bf16.mxu0 0
  %325 = vmatmul.mubr.bf16.gmra.mrb[0].mxu0 %v230
  %v326 = vpop.f32.mrb[0].mxu0
  %v327 = vadd.f32 0.0, %v326
  %v328 = vpop.f32.mrb[0].mxu0
  %v329 = vadd.f32 0.0, %v328
  %v330 = vpop.f32.mrb[0].mxu0
  %v331 = vpop.f32.mrb[0].mxu0
  %332 = vdwg.mxu0
  %333 = vmatprep.subr.bf16.mxu0 %v203
  %334 = vmatpush1.bf16.msra.mxu0 %v202
  %335 = vmatprep.subr.bf16.mxu0 %v209
  %336 = vmatpush1.bf16.msra.mxu0 %v208
  %337 = vmatprep.subr.bf16.mxu0 %v215
  %338 = vmatpush1.bf16.msra.mxu0 %v214
  %339 = vmatprep.subr.bf16.mxu0 %v221
  %340 = vmatpush1.bf16.msra.mxu0 %v220
  %341 = vmatprep.subr.bf16.mxu0 %v249
  %342 = vmatpush1.bf16.msra.mxu0 %v246
  %343 = vmatprep.subr.bf16.mxu0 0
  %344 = vmatpush1.bf16.msra.mxu0 0
  %345 = vmatprep.subr.bf16.mxu0 0
  %346 = vmatpush1.bf16.msra.mxu0 0
  %347 = vmatprep.subr.bf16.mxu0 0
  %348 = vmatpush1.bf16.msra.mxu0 0
  %349 = vmatprep.subr.bf16.mxu0 0
  %350 = vmatpush1.bf16.msra.mxu0 0
  %351 = vmatprep.subr.bf16.mxu0 0
  %352 = vmatpush1.bf16.msra.mxu0 0
  %353 = vmatprep.subr.bf16.mxu0 0
  %354 = vmatpush1.bf16.msra.mxu0 0
  %355 = vmatprep.subr.bf16.mxu0 0
  %356 = vmatpush1.bf16.msra.mxu0 0
  %357 = vmatprep.subr.bf16.mxu0 0
  %358 = vmatpush1.bf16.msra.mxu0 0
  %359 = vmatprep.subr.bf16.mxu0 0
  %360 = vmatpush1.bf16.msra.mxu0 0
  %361 = vmatprep.subr.bf16.mxu0 0
  %362 = vmatpush1.bf16.msra.mxu0 0
  %363 = vmatprep.subr.bf16.mxu0 0
  %364 = vmatpush1.bf16.msra.mxu0 0
  %365 = vmatprep.mubr.bf16.mxu0 0
  %366 = vmatmul.mubr.bf16.gmra.mrb[0].mxu0 %v230
  %v367 = vpop.f32.mrb[0].mxu0
  %v368 = vadd.f32 0.0, %v367
  %v369 = vpop.f32.mrb[0].mxu0
  %v370 = vadd.f32 0.0, %v369
  %v371 = vpop.f32.mrb[0].mxu0
  %v372 = vpop.f32.mrb[0].mxu0
  %373 = vdwg.mxu0
  %v375 = vlaneseq
  %v376 = vshrl.u32 %v375, 7
  %v377 = vsub.s32 0, %v376
  %v378 = vrot.slane %v33, %v377
  %v379 = vlaneseq
  %v380 = vshrl.u32 %v379, 7
  %v381 = vsub.s32 1, %v380
  %v382 = vrot.slane %v33, %v381
  %v383 = vlaneseq
  %v384 = vshrl.u32 %v383, 7
  %v385 = vsub.s32 2, %v384
  %v386 = vrot.slane %v33, %v385
  %v387 = vlaneseq
  %v388 = vshrl.u32 %v387, 7
  %v389 = vsub.s32 3, %v388
  %v390 = vrot.slane %v33, %v389
  %v391 = vlaneseq
  %v392 = vshrl.u32 %v391, 7
  %v393 = vsub.s32 4, %v392
  %v394 = vrot.slane %v33, %v393
  %v395 = vlaneseq
  %v396 = vshrl.u32 %v395, 7
  %v397 = vsub.s32 5, %v396
  %v398 = vrot.slane %v33, %v397
  %v405 = vmul.f32 %v286, %v378
  %v406 = vmul.f32 %v288, %v382
  %v407 = vmul.f32 %v327, %v386
  %v408 = vmul.f32 %v329, %v390
  %v409 = vmul.f32 %v368, %v394
  %v410 = vmul.f32 %v370, %v398
  %v411 = vadd.f32 %v405, %v406
  %v412 = vadd.f32 %v411, %v407
  %v413 = vadd.f32 %v412, %v408
  %v414 = vadd.f32 %v413, %v409
  %v415 = vadd.f32 %v414, %v410
  %416 = vadd.xlane.f32.xlu0 %v415
  %v417 = vpop.xlane.xlu0 %416
  %v418 = vmul.f32 %v417, 0.001953125
  %v419 = vmul.f32 %v405, %v286
  %v420 = vmul.f32 %v406, %v288
  %v421 = vmul.f32 %v407, %v327
  %v422 = vmul.f32 %v408, %v329
  %v423 = vmul.f32 %v409, %v368
  %v424 = vmul.f32 %v410, %v370
  %v425 = vadd.f32 %v419, %v420
  %v426 = vadd.f32 %v425, %v421
  %v427 = vadd.f32 %v426, %v422
  %v428 = vadd.f32 %v427, %v423
  %v429 = vadd.f32 %v428, %v424
  %430 = vadd.xlane.f32.xlu0 %v429
  %v431 = vpop.xlane.xlu0 %430
  %v432 = vmul.f32 %v431, 0.001953125
  %v433 = vmul.f32 %v418, %v418
  %v434 = vsub.f32 %v432, %v433
  %v435 = vadd.f32 %v434, 1e-05
  %v436 = vrsqrt.pop %v435
  %v437 = vmul.f32 %v41, %v436
  %v438 = vsub.f32 %v286, %v418
  %v439 = vsub.f32 %v288, %v418
  %v440 = vsub.f32 %v327, %v418
  %v441 = vsub.f32 %v329, %v418
  %v442 = vsub.f32 %v368, %v418
  %v443 = vsub.f32 %v370, %v418
  %445 = vset.pattern.permute.xlu0 0
  %446 = vperm.xlu0 %445, %v437
  %v447 = vpop.permute.xlu0 %446
  %v449 = vmul.f32 %v438, %v447
  %v450 = vmul.f32 %v439, %v447
  %v451 = vmul.f32 %v440, %v447
  %v452 = vmul.f32 %v441, %v447
  %v453 = vmul.f32 %v442, %v447
  %v454 = vmul.f32 %v443, %v447
  %456 = vset.pattern.permute.xlu0 0
  %457 = vperm.xlu0 %456, %v42
  %v458 = vpop.permute.xlu0 %457
  %v460 = vadd.f32 %v449, %v458
  %v461 = vadd.f32 %v450, %v458
  %v462 = vadd.f32 %v451, %v458
  %v463 = vadd.f32 %v452, %v458
  %v464 = vadd.f32 %v453, %v458
  %v465 = vadd.f32 %v454, %v458
  %vm466 = vcmp.ge.f32.partialorder %v460, 0.0
  %vm467 = vcmp.ge.f32.partialorder %v461, 0.0
  %vm468 = vcmp.ge.f32.partialorder %v462, 0.0
  %vm469 = vcmp.ge.f32.partialorder %v463, 0.0
  %vm470 = vcmp.ge.f32.partialorder %v464, 0.0
  %vm471 = vcmp.ge.f32.partialorder %v465, 0.0
  %v472 = vmul.f32 %v460, 0.01
  %v473 = vmul.f32 %v461, 0.01
  %v474 = vmul.f32 %v462, 0.01
  %v475 = vmul.f32 %v463, 0.01
  %v476 = vmul.f32 %v464, 0.01
  %v477 = vmul.f32 %v465, 0.01
  %v478 = vsel %vm466, %v460, %v472
  %v479 = vsel %vm467, %v461, %v473
  %v480 = vsel %vm468, %v462, %v474
  %v481 = vsel %vm469, %v463, %v475
  %v482 = vsel %vm470, %v464, %v476
  %v483 = vsel %vm471, %v465, %v477
  %v484 = vmul.f32 %v478, %v378
  %v485 = vmul.f32 %v479, %v382
  %v486 = vmul.f32 %v480, %v386
  %v487 = vmul.f32 %v481, %v390
  %v488 = vmul.f32 %v482, %v394
  %v489 = vmul.f32 %v483, %v398
  %490 = vrot.lane.b32.xlu0 %v484, 19
  %v491 = vpop.permute.xlu0 %490
  %492 = vrot.lane.b32.xlu0 %v485, 19
  %v493 = vpop.permute.xlu0 %492
  %494 = vrot.lane.b32.xlu0 %v486, 19
  %v495 = vpop.permute.xlu0 %494
  %496 = vrot.lane.b32.xlu0 %v487, 19
  %v497 = vpop.permute.xlu0 %496
  %498 = vrot.lane.b32.xlu0 %v488, 19
  %v499 = vpop.permute.xlu0 %498
  %500 = vrot.lane.b32.xlu0 %v489, 19
  %v501 = vpop.permute.xlu0 %500
  %v502 = vsel %vm58, %v499, %v501
  %v503 = vsel %vm58, %v497, %v499
  %v504 = vsel %vm58, %v495, %v497
  %v505 = vsel %vm58, %v493, %v495
  %v506 = vsel %vm58, %v491, %v493
  %v507 = vsel %vm58, %v501, %v491
  %508 = vrot.lane.b32.xlu0 %v484, 18
  %v509 = vpop.permute.xlu0 %508
  %510 = vrot.lane.b32.xlu0 %v485, 18
  %v511 = vpop.permute.xlu0 %510
  %512 = vrot.lane.b32.xlu0 %v486, 18
  %v513 = vpop.permute.xlu0 %512
  %514 = vrot.lane.b32.xlu0 %v487, 18
  %v515 = vpop.permute.xlu0 %514
  %516 = vrot.lane.b32.xlu0 %v488, 18
  %v517 = vpop.permute.xlu0 %516
  %518 = vrot.lane.b32.xlu0 %v489, 18
  %v519 = vpop.permute.xlu0 %518
  %v520 = vsel %vm77, %v517, %v519
  %v521 = vsel %vm77, %v515, %v517
  %v522 = vsel %vm77, %v513, %v515
  %v523 = vsel %vm77, %v511, %v513
  %v524 = vsel %vm77, %v509, %v511
  %v525 = vsel %vm77, %v519, %v509
  %526 = vrot.lane.b32.xlu0 %v484, 17
  %v527 = vpop.permute.xlu0 %526
  %528 = vrot.lane.b32.xlu0 %v485, 17
  %v529 = vpop.permute.xlu0 %528
  %530 = vrot.lane.b32.xlu0 %v486, 17
  %v531 = vpop.permute.xlu0 %530
  %532 = vrot.lane.b32.xlu0 %v487, 17
  %v533 = vpop.permute.xlu0 %532
  %534 = vrot.lane.b32.xlu0 %v488, 17
  %v535 = vpop.permute.xlu0 %534
  %536 = vrot.lane.b32.xlu0 %v489, 17
  %v537 = vpop.permute.xlu0 %536
  %v538 = vsel %vm96, %v535, %v537
  %v539 = vsel %vm96, %v533, %v535
  %v540 = vsel %vm96, %v531, %v533
  %v541 = vsel %vm96, %v529, %v531
  %v542 = vsel %vm96, %v527, %v529
  %v543 = vsel %vm96, %v537, %v527
  %544 = vrot.lane.b32.xlu0 %v484, 1
  %v545 = vpop.permute.xlu0 %544
  %546 = vrot.lane.b32.xlu0 %v485, 1
  %v547 = vpop.permute.xlu0 %546
  %548 = vrot.lane.b32.xlu0 %v486, 1
  %v549 = vpop.permute.xlu0 %548
  %550 = vrot.lane.b32.xlu0 %v487, 1
  %v551 = vpop.permute.xlu0 %550
  %552 = vrot.lane.b32.xlu0 %v488, 1
  %v553 = vpop.permute.xlu0 %552
  %554 = vrot.lane.b32.xlu0 %v489, 1
  %v555 = vpop.permute.xlu0 %554
  %v556 = vsel %vm115, %v553, %v555
  %v557 = vsel %vm115, %v551, %v553
  %v558 = vsel %vm115, %v549, %v551
  %v559 = vsel %vm115, %v547, %v549
  %v560 = vsel %vm115, %v545, %v547
  %v561 = vsel %vm115, %v555, %v545
  %562 = vrot.lane.b32.xlu0 %v484, 127
  %v563 = vpop.permute.xlu0 %562
  %564 = vrot.lane.b32.xlu0 %v485, 127
  %v565 = vpop.permute.xlu0 %564
  %566 = vrot.lane.b32.xlu0 %v486, 127
  %v567 = vpop.permute.xlu0 %566
  %568 = vrot.lane.b32.xlu0 %v487, 127
  %v569 = vpop.permute.xlu0 %568
  %570 = vrot.lane.b32.xlu0 %v488, 127
  %v571 = vpop.permute.xlu0 %570
  %572 = vrot.lane.b32.xlu0 %v489, 127
  %v573 = vpop.permute.xlu0 %572
  %v574 = vsel %vm134, %v571, %v573
  %v575 = vsel %vm134, %v569, %v571
  %v576 = vsel %vm134, %v567, %v569
  %v577 = vsel %vm134, %v565, %v567
  %v578 = vsel %vm134, %v563, %v565
  %v579 = vsel %vm134, %v573, %v563
  %580 = vrot.lane.b32.xlu0 %v484, 111
  %v581 = vpop.permute.xlu0 %580
  %582 = vrot.lane.b32.xlu0 %v485, 111
  %v583 = vpop.permute.xlu0 %582
  %584 = vrot.lane.b32.xlu0 %v486, 111
  %v585 = vpop.permute.xlu0 %584
  %586 = vrot.lane.b32.xlu0 %v487, 111
  %v587 = vpop.permute.xlu0 %586
  %588 = vrot.lane.b32.xlu0 %v488, 111
  %v589 = vpop.permute.xlu0 %588
  %590 = vrot.lane.b32.xlu0 %v489, 111
  %v591 = vpop.permute.xlu0 %590
  %v592 = vsel %vm153, %v589, %v591
  %v593 = vsel %vm153, %v587, %v589
  %v594 = vsel %vm153, %v585, %v587
  %v595 = vsel %vm153, %v583, %v585
  %v596 = vsel %vm153, %v581, %v583
  %v597 = vsel %vm153, %v591, %v581
  %598 = vrot.lane.b32.xlu0 %v484, 110
  %v599 = vpop.permute.xlu0 %598
  %600 = vrot.lane.b32.xlu0 %v485, 110
  %v601 = vpop.permute.xlu0 %600
  %602 = vrot.lane.b32.xlu0 %v486, 110
  %v603 = vpop.permute.xlu0 %602
  %604 = vrot.lane.b32.xlu0 %v487, 110
  %v605 = vpop.permute.xlu0 %604
  %606 = vrot.lane.b32.xlu0 %v488, 110
  %v607 = vpop.permute.xlu0 %606
  %608 = vrot.lane.b32.xlu0 %v489, 110
  %v609 = vpop.permute.xlu0 %608
  %v610 = vsel %vm172, %v607, %v609
  %v611 = vsel %vm172, %v605, %v607
  %v612 = vsel %vm172, %v603, %v605
  %v613 = vsel %vm172, %v601, %v603
  %v614 = vsel %vm172, %v599, %v601
  %v615 = vsel %vm172, %v609, %v599
  %616 = vrot.lane.b32.xlu0 %v484, 109
  %v617 = vpop.permute.xlu0 %616
  %618 = vrot.lane.b32.xlu0 %v485, 109
  %v619 = vpop.permute.xlu0 %618
  %620 = vrot.lane.b32.xlu0 %v486, 109
  %v621 = vpop.permute.xlu0 %620
  %622 = vrot.lane.b32.xlu0 %v487, 109
  %v623 = vpop.permute.xlu0 %622
  %624 = vrot.lane.b32.xlu0 %v488, 109
  %v625 = vpop.permute.xlu0 %624
  %626 = vrot.lane.b32.xlu0 %v489, 109
  %v627 = vpop.permute.xlu0 %626
  %v628 = vsel %vm191, %v625, %v627
  %v629 = vsel %vm191, %v623, %v625
  %v630 = vsel %vm191, %v621, %v623
  %v631 = vsel %vm191, %v619, %v621
  %v632 = vsel %vm191, %v617, %v619
  %v633 = vsel %vm191, %v627, %v617
  %v634 = vpack.c.bf16 %v525, %v507
  %v635 = vpack.c.bf16 %v524, %v506
  %v636 = vpack.c.bf16 %v523, %v505
  %v637 = vpack.c.bf16 %v522, %v504
  %v638 = vpack.c.bf16 %v521, %v503
  %v639 = vpack.c.bf16 %v520, %v502
  %v640 = vpack.c.bf16 %v561, %v543
  %v641 = vpack.c.bf16 %v560, %v542
  %v642 = vpack.c.bf16 %v559, %v541
  %v643 = vpack.c.bf16 %v558, %v540
  %v644 = vpack.c.bf16 %v557, %v539
  %v645 = vpack.c.bf16 %v556, %v538
  %v646 = vpack.c.bf16 %v578, %v484
  %v647 = vpack.c.bf16 %v577, %v485
  %v648 = vpack.c.bf16 %v576, %v486
  %v649 = vpack.c.bf16 %v575, %v487
  %v650 = vpack.c.bf16 %v574, %v488
  %v651 = vpack.c.bf16 %v579, %v489
  %v652 = vpack.c.bf16 %v614, %v596
  %v653 = vpack.c.bf16 %v613, %v595
  %v654 = vpack.c.bf16 %v612, %v594
  %v655 = vpack.c.bf16 %v611, %v593
  %v656 = vpack.c.bf16 %v610, %v592
  %v657 = vpack.c.bf16 %v615, %v597
  %v658 = vpack.c.bf16 %v632, %v632
  %v659 = vpack.c.bf16 %v631, %v631
  %v660 = vpack.c.bf16 %v630, %v630
  %v661 = vpack.c.bf16 %v629, %v629
  %v662 = vpack.c.bf16 %v628, %v628
  %v663 = vpack.c.bf16 %v633, %v633
  %v665 = vsel %vm232, %v658, 0
  %v668 = vsel %vm232, %v659, 0
  %v671 = vsel %vm232, %v660, 0
  %v674 = vsel %vm232, %v661, 0
  %v677 = vsel %vm232, %v662, 0
  %v680 = vsel %vm232, %v663, 0
  %682 = vmatprep.subr.bf16.mxu0 %v635
  %683 = vmatpush1.bf16.msra.mxu0 %v634
  %684 = vmatprep.subr.bf16.mxu0 %v641
  %685 = vmatpush1.bf16.msra.mxu0 %v640
  %686 = vmatprep.subr.bf16.mxu0 %v647
  %687 = vmatpush1.bf16.msra.mxu0 %v646
  %688 = vmatprep.subr.bf16.mxu0 %v653
  %689 = vmatpush1.bf16.msra.mxu0 %v652
  %690 = vmatprep.subr.bf16.mxu0 %v668
  %691 = vmatpush1.bf16.msra.mxu0 %v665
  %692 = vmatprep.subr.bf16.mxu0 0
  %693 = vmatpush1.bf16.msra.mxu0 0
  %694 = vmatprep.subr.bf16.mxu0 0
  %695 = vmatpush1.bf16.msra.mxu0 0
  %696 = vmatprep.subr.bf16.mxu0 0
  %697 = vmatpush1.bf16.msra.mxu0 0
  %698 = vmatprep.subr.bf16.mxu0 0
  %699 = vmatpush1.bf16.msra.mxu0 0
  %700 = vmatprep.subr.bf16.mxu0 0
  %701 = vmatpush1.bf16.msra.mxu0 0
  %702 = vmatprep.subr.bf16.mxu0 0
  %703 = vmatpush1.bf16.msra.mxu0 0
  %704 = vmatprep.subr.bf16.mxu0 0
  %705 = vmatpush1.bf16.msra.mxu0 0
  %706 = vmatprep.subr.bf16.mxu0 0
  %707 = vmatpush1.bf16.msra.mxu0 0
  %708 = vmatprep.subr.bf16.mxu0 0
  %709 = vmatpush1.bf16.msra.mxu0 0
  %710 = vmatprep.subr.bf16.mxu0 0
  %711 = vmatpush1.bf16.msra.mxu0 0
  %712 = vmatprep.subr.bf16.mxu0 0
  %713 = vmatpush1.bf16.msra.mxu0 0
  %714 = vmatprep.mubr.bf16.mxu0 0
  %715 = vmatmul.mubr.bf16.gmra.mrb[0].mxu0 %v230
  %v716 = vpop.f32.mrb[0].mxu0
  %v717 = vadd.f32 0.0, %v716
  %v718 = vpop.f32.mrb[0].mxu0
  %v719 = vadd.f32 0.0, %v718
  %v720 = vpop.f32.mrb[0].mxu0
  %v721 = vpop.f32.mrb[0].mxu0
  %722 = vdwg.mxu0
  %723 = vmatprep.subr.bf16.mxu0 %v637
  %724 = vmatpush1.bf16.msra.mxu0 %v636
  %725 = vmatprep.subr.bf16.mxu0 %v643
  %726 = vmatpush1.bf16.msra.mxu0 %v642
  %727 = vmatprep.subr.bf16.mxu0 %v649
  %728 = vmatpush1.bf16.msra.mxu0 %v648
  %729 = vmatprep.subr.bf16.mxu0 %v655
  %730 = vmatpush1.bf16.msra.mxu0 %v654
  %731 = vmatprep.subr.bf16.mxu0 %v674
  %732 = vmatpush1.bf16.msra.mxu0 %v671
  %733 = vmatprep.subr.bf16.mxu0 0
  %734 = vmatpush1.bf16.msra.mxu0 0
  %735 = vmatprep.subr.bf16.mxu0 0
  %736 = vmatpush1.bf16.msra.mxu0 0
  %737 = vmatprep.subr.bf16.mxu0 0
  %738 = vmatpush1.bf16.msra.mxu0 0
  %739 = vmatprep.subr.bf16.mxu0 0
  %740 = vmatpush1.bf16.msra.mxu0 0
  %741 = vmatprep.subr.bf16.mxu0 0
  %742 = vmatpush1.bf16.msra.mxu0 0
  %743 = vmatprep.subr.bf16.mxu0 0
  %744 = vmatpush1.bf16.msra.mxu0 0
  %745 = vmatprep.subr.bf16.mxu0 0
  %746 = vmatpush1.bf16.msra.mxu0 0
  %747 = vmatprep.subr.bf16.mxu0 0
  %748 = vmatpush1.bf16.msra.mxu0 0
  %749 = vmatprep.subr.bf16.mxu0 0
  %750 = vmatpush1.bf16.msra.mxu0 0
  %751 = vmatprep.subr.bf16.mxu0 0
  %752 = vmatpush1.bf16.msra.mxu0 0
  %753 = vmatprep.subr.bf16.mxu0 0
  %754 = vmatpush1.bf16.msra.mxu0 0
  %755 = vmatprep.mubr.bf16.mxu0 0
  %756 = vmatmul.mubr.bf16.gmra.mrb[0].mxu0 %v230
  %v757 = vpop.f32.mrb[0].mxu0
  %v758 = vadd.f32 0.0, %v757
  %v759 = vpop.f32.mrb[0].mxu0
  %v760 = vadd.f32 0.0, %v759
  %v761 = vpop.f32.mrb[0].mxu0
  %v762 = vpop.f32.mrb[0].mxu0
  %763 = vdwg.mxu0
  %764 = vmatprep.subr.bf16.mxu0 %v639
  %765 = vmatpush1.bf16.msra.mxu0 %v638
  %766 = vmatprep.subr.bf16.mxu0 %v645
  %767 = vmatpush1.bf16.msra.mxu0 %v644
  %768 = vmatprep.subr.bf16.mxu0 %v651
  %769 = vmatpush1.bf16.msra.mxu0 %v650
  %770 = vmatprep.subr.bf16.mxu0 %v657
  %771 = vmatpush1.bf16.msra.mxu0 %v656
  %772 = vmatprep.subr.bf16.mxu0 %v680
  %773 = vmatpush1.bf16.msra.mxu0 %v677
  %774 = vmatprep.subr.bf16.mxu0 0
  %775 = vmatpush1.bf16.msra.mxu0 0
  %776 = vmatprep.subr.bf16.mxu0 0
  %777 = vmatpush1.bf16.msra.mxu0 0
  %778 = vmatprep.subr.bf16.mxu0 0
  %779 = vmatpush1.bf16.msra.mxu0 0
  %780 = vmatprep.subr.bf16.mxu0 0
  %781 = vmatpush1.bf16.msra.mxu0 0
  %782 = vmatprep.subr.bf16.mxu0 0
  %783 = vmatpush1.bf16.msra.mxu0 0
  %784 = vmatprep.subr.bf16.mxu0 0
  %785 = vmatpush1.bf16.msra.mxu0 0
  %786 = vmatprep.subr.bf16.mxu0 0
  %787 = vmatpush1.bf16.msra.mxu0 0
  %788 = vmatprep.subr.bf16.mxu0 0
  %789 = vmatpush1.bf16.msra.mxu0 0
  %790 = vmatprep.subr.bf16.mxu0 0
  %791 = vmatpush1.bf16.msra.mxu0 0
  %792 = vmatprep.subr.bf16.mxu0 0
  %793 = vmatpush1.bf16.msra.mxu0 0
  %794 = vmatprep.subr.bf16.mxu0 0
  %795 = vmatpush1.bf16.msra.mxu0 0
  %796 = vmatprep.mubr.bf16.mxu0 0
  %797 = vmatmul.mubr.bf16.gmra.mrb[0].mxu0 %v230
  %v798 = vpop.f32.mrb[0].mxu0
  %v799 = vadd.f32 0.0, %v798
  %v800 = vpop.f32.mrb[0].mxu0
  %v801 = vadd.f32 0.0, %v800
  %v802 = vpop.f32.mrb[0].mxu0
  %v803 = vpop.f32.mrb[0].mxu0
  %804 = vdwg.mxu0
  %v805 = vmul.f32 %v717, %v378
  %v806 = vmul.f32 %v719, %v382
  %v807 = vmul.f32 %v758, %v386
  %v808 = vmul.f32 %v760, %v390
  %v809 = vmul.f32 %v799, %v394
  %v810 = vmul.f32 %v801, %v398
  %v811 = vadd.f32 %v805, %v806
  %v812 = vadd.f32 %v811, %v807
  %v813 = vadd.f32 %v812, %v808
  %v814 = vadd.f32 %v813, %v809
  %v815 = vadd.f32 %v814, %v810
  %816 = vadd.xlane.f32.xlu0 %v815
  %v817 = vpop.xlane.xlu0 %816
  %v818 = vmul.f32 %v817, 0.001953125
  %v819 = vmul.f32 %v805, %v717
  %v820 = vmul.f32 %v806, %v719
  %v821 = vmul.f32 %v807, %v758
  %v822 = vmul.f32 %v808, %v760
  %v823 = vmul.f32 %v809, %v799
  %v824 = vmul.f32 %v810, %v801
  %v825 = vadd.f32 %v819, %v820
  %v826 = vadd.f32 %v825, %v821
  %v827 = vadd.f32 %v826, %v822
  %v828 = vadd.f32 %v827, %v823
  %v829 = vadd.f32 %v828, %v824
  %830 = vadd.xlane.f32.xlu0 %v829
  %v831 = vpop.xlane.xlu0 %830
  %v832 = vmul.f32 %v831, 0.001953125
  %v833 = vmul.f32 %v818, %v818
  %v834 = vsub.f32 %v832, %v833
  %v835 = vadd.f32 %v834, 1e-05
  %v836 = vrsqrt.pop %v835
  %v837 = vmul.f32 %v41, %v836
  %v838 = vsub.f32 %v717, %v818
  %v839 = vsub.f32 %v719, %v818
  %v840 = vsub.f32 %v758, %v818
  %v841 = vsub.f32 %v760, %v818
  %v842 = vsub.f32 %v799, %v818
  %v843 = vsub.f32 %v801, %v818
  %845 = vset.pattern.permute.xlu0 0
  %846 = vperm.xlu0 %845, %v837
  %v847 = vpop.permute.xlu0 %846
  %v849 = vmul.f32 %v838, %v847
  %v850 = vmul.f32 %v839, %v847
  %v851 = vmul.f32 %v840, %v847
  %v852 = vmul.f32 %v841, %v847
  %v853 = vmul.f32 %v842, %v847
  %v854 = vmul.f32 %v843, %v847
  %v855 = vadd.f32 %v849, %v458
  %v856 = vadd.f32 %v850, %v458
  %v857 = vadd.f32 %v851, %v458
  %v858 = vadd.f32 %v852, %v458
  %v859 = vadd.f32 %v853, %v458
  %v860 = vadd.f32 %v854, %v458
  %vm861 = vcmp.ge.f32.partialorder %v855, 0.0
  %vm862 = vcmp.ge.f32.partialorder %v856, 0.0
  %vm863 = vcmp.ge.f32.partialorder %v857, 0.0
  %vm864 = vcmp.ge.f32.partialorder %v858, 0.0
  %vm865 = vcmp.ge.f32.partialorder %v859, 0.0
  %vm866 = vcmp.ge.f32.partialorder %v860, 0.0
  %v867 = vmul.f32 %v855, 0.01
  %v868 = vmul.f32 %v856, 0.01
  %v869 = vmul.f32 %v857, 0.01
  %v870 = vmul.f32 %v858, 0.01
  %v871 = vmul.f32 %v859, 0.01
  %v872 = vmul.f32 %v860, 0.01
  %v873 = vsel %vm861, %v855, %v867
  %v874 = vsel %vm862, %v856, %v868
  %v875 = vsel %vm863, %v857, %v869
  %v876 = vsel %vm864, %v858, %v870
  %v877 = vsel %vm865, %v859, %v871
  %v878 = vsel %vm866, %v860, %v872
  %v879 = vmul.f32 %v873, %v378
  %v880 = vmul.f32 %v874, %v382
  %v881 = vmul.f32 %v875, %v386
  %v882 = vmul.f32 %v876, %v390
  %v883 = vmul.f32 %v877, %v394
  %v884 = vmul.f32 %v878, %v398
  %v885 = vadd.f32 %v34, %v879
  %v886 = vadd.f32 %v35, %v880
  %v887 = vadd.f32 %v36, %v881
  %v888 = vadd.f32 %v37, %v882
  %v889 = vadd.f32 %v38, %v883
  %v890 = vadd.f32 %v39, %v884
  %s891 = scalar_lea.vmem %s1, 8
  %v892 = vld [vmem:[%s891] sm:$0xff]
  %s893 = scalar_lea.vmem %s2, 8
  %v894 = vld [vmem:[%s893] sm:$0xff]
  %s895 = scalar_lea.vmem %s3, 8
  %v896 = vld [vmem:[%s895] sm:$0xff]
  %v897 = vpack.c.bf16 %v892, %v892
  %898 = vrot.lane.b32.xlu0 %v885, 19
  %v899 = vpop.permute.xlu0 %898
  %900 = vrot.lane.b32.xlu0 %v886, 19
  %v901 = vpop.permute.xlu0 %900
  %902 = vrot.lane.b32.xlu0 %v887, 19
  %v903 = vpop.permute.xlu0 %902
  %904 = vrot.lane.b32.xlu0 %v888, 19
  %v905 = vpop.permute.xlu0 %904
  %906 = vrot.lane.b32.xlu0 %v889, 19
  %v907 = vpop.permute.xlu0 %906
  %908 = vrot.lane.b32.xlu0 %v890, 19
  %v909 = vpop.permute.xlu0 %908
  %v910 = vsel %vm58, %v907, %v909
  %v911 = vsel %vm58, %v905, %v907
  %v912 = vsel %vm58, %v903, %v905
  %v913 = vsel %vm58, %v901, %v903
  %v914 = vsel %vm58, %v899, %v901
  %v915 = vsel %vm58, %v909, %v899
  %916 = vrot.lane.b32.xlu0 %v885, 18
  %v917 = vpop.permute.xlu0 %916
  %918 = vrot.lane.b32.xlu0 %v886, 18
  %v919 = vpop.permute.xlu0 %918
  %920 = vrot.lane.b32.xlu0 %v887, 18
  %v921 = vpop.permute.xlu0 %920
  %922 = vrot.lane.b32.xlu0 %v888, 18
  %v923 = vpop.permute.xlu0 %922
  %924 = vrot.lane.b32.xlu0 %v889, 18
  %v925 = vpop.permute.xlu0 %924
  %926 = vrot.lane.b32.xlu0 %v890, 18
  %v927 = vpop.permute.xlu0 %926
  %v928 = vsel %vm77, %v925, %v927
  %v929 = vsel %vm77, %v923, %v925
  %v930 = vsel %vm77, %v921, %v923
  %v931 = vsel %vm77, %v919, %v921
  %v932 = vsel %vm77, %v917, %v919
  %v933 = vsel %vm77, %v927, %v917
  %934 = vrot.lane.b32.xlu0 %v885, 17
  %v935 = vpop.permute.xlu0 %934
  %936 = vrot.lane.b32.xlu0 %v886, 17
  %v937 = vpop.permute.xlu0 %936
  %938 = vrot.lane.b32.xlu0 %v887, 17
  %v939 = vpop.permute.xlu0 %938
  %940 = vrot.lane.b32.xlu0 %v888, 17
  %v941 = vpop.permute.xlu0 %940
  %942 = vrot.lane.b32.xlu0 %v889, 17
  %v943 = vpop.permute.xlu0 %942
  %944 = vrot.lane.b32.xlu0 %v890, 17
  %v945 = vpop.permute.xlu0 %944
  %v946 = vsel %vm96, %v943, %v945
  %v947 = vsel %vm96, %v941, %v943
  %v948 = vsel %vm96, %v939, %v941
  %v949 = vsel %vm96, %v937, %v939
  %v950 = vsel %vm96, %v935, %v937
  %v951 = vsel %vm96, %v945, %v935
  %952 = vrot.lane.b32.xlu0 %v885, 1
  %v953 = vpop.permute.xlu0 %952
  %954 = vrot.lane.b32.xlu0 %v886, 1
  %v955 = vpop.permute.xlu0 %954
  %956 = vrot.lane.b32.xlu0 %v887, 1
  %v957 = vpop.permute.xlu0 %956
  %958 = vrot.lane.b32.xlu0 %v888, 1
  %v959 = vpop.permute.xlu0 %958
  %960 = vrot.lane.b32.xlu0 %v889, 1
  %v961 = vpop.permute.xlu0 %960
  %962 = vrot.lane.b32.xlu0 %v890, 1
  %v963 = vpop.permute.xlu0 %962
  %v964 = vsel %vm115, %v961, %v963
  %v965 = vsel %vm115, %v959, %v961
  %v966 = vsel %vm115, %v957, %v959
  %v967 = vsel %vm115, %v955, %v957
  %v968 = vsel %vm115, %v953, %v955
  %v969 = vsel %vm115, %v963, %v953
  %970 = vrot.lane.b32.xlu0 %v885, 127
  %v971 = vpop.permute.xlu0 %970
  %972 = vrot.lane.b32.xlu0 %v886, 127
  %v973 = vpop.permute.xlu0 %972
  %974 = vrot.lane.b32.xlu0 %v887, 127
  %v975 = vpop.permute.xlu0 %974
  %976 = vrot.lane.b32.xlu0 %v888, 127
  %v977 = vpop.permute.xlu0 %976
  %978 = vrot.lane.b32.xlu0 %v889, 127
  %v979 = vpop.permute.xlu0 %978
  %980 = vrot.lane.b32.xlu0 %v890, 127
  %v981 = vpop.permute.xlu0 %980
  %v982 = vsel %vm134, %v979, %v981
  %v983 = vsel %vm134, %v977, %v979
  %v984 = vsel %vm134, %v975, %v977
  %v985 = vsel %vm134, %v973, %v975
  %v986 = vsel %vm134, %v971, %v973
  %v987 = vsel %vm134, %v981, %v971
  %988 = vrot.lane.b32.xlu0 %v885, 111
  %v989 = vpop.permute.xlu0 %988
  %990 = vrot.lane.b32.xlu0 %v886, 111
  %v991 = vpop.permute.xlu0 %990
  %992 = vrot.lane.b32.xlu0 %v887, 111
  %v993 = vpop.permute.xlu0 %992
  %994 = vrot.lane.b32.xlu0 %v888, 111
  %v995 = vpop.permute.xlu0 %994
  %996 = vrot.lane.b32.xlu0 %v889, 111
  %v997 = vpop.permute.xlu0 %996
  %998 = vrot.lane.b32.xlu0 %v890, 111
  %v999 = vpop.permute.xlu0 %998
  %v1000 = vsel %vm153, %v997, %v999
  %v1001 = vsel %vm153, %v995, %v997
  %v1002 = vsel %vm153, %v993, %v995
  %v1003 = vsel %vm153, %v991, %v993
  %v1004 = vsel %vm153, %v989, %v991
  %v1005 = vsel %vm153, %v999, %v989
  %1006 = vrot.lane.b32.xlu0 %v885, 110
  %v1007 = vpop.permute.xlu0 %1006
  %1008 = vrot.lane.b32.xlu0 %v886, 110
  %v1009 = vpop.permute.xlu0 %1008
  %1010 = vrot.lane.b32.xlu0 %v887, 110
  %v1011 = vpop.permute.xlu0 %1010
  %1012 = vrot.lane.b32.xlu0 %v888, 110
  %v1013 = vpop.permute.xlu0 %1012
  %1014 = vrot.lane.b32.xlu0 %v889, 110
  %v1015 = vpop.permute.xlu0 %1014
  %1016 = vrot.lane.b32.xlu0 %v890, 110
  %v1017 = vpop.permute.xlu0 %1016
  %v1018 = vsel %vm172, %v1015, %v1017
  %v1019 = vsel %vm172, %v1013, %v1015
  %v1020 = vsel %vm172, %v1011, %v1013
  %v1021 = vsel %vm172, %v1009, %v1011
  %v1022 = vsel %vm172, %v1007, %v1009
  %v1023 = vsel %vm172, %v1017, %v1007
  %1024 = vrot.lane.b32.xlu0 %v885, 109
  %v1025 = vpop.permute.xlu0 %1024
  %1026 = vrot.lane.b32.xlu0 %v886, 109
  %v1027 = vpop.permute.xlu0 %1026
  %1028 = vrot.lane.b32.xlu0 %v887, 109
  %v1029 = vpop.permute.xlu0 %1028
  %1030 = vrot.lane.b32.xlu0 %v888, 109
  %v1031 = vpop.permute.xlu0 %1030
  %1032 = vrot.lane.b32.xlu0 %v889, 109
  %v1033 = vpop.permute.xlu0 %1032
  %1034 = vrot.lane.b32.xlu0 %v890, 109
  %v1035 = vpop.permute.xlu0 %1034
  %v1036 = vsel %vm191, %v1033, %v1035
  %v1037 = vsel %vm191, %v1031, %v1033
  %v1038 = vsel %vm191, %v1029, %v1031
  %v1039 = vsel %vm191, %v1027, %v1029
  %v1040 = vsel %vm191, %v1025, %v1027
  %v1041 = vsel %vm191, %v1035, %v1025
  %v1042 = vpack.c.bf16 %v933, %v915
  %v1043 = vpack.c.bf16 %v932, %v914
  %v1044 = vpack.c.bf16 %v931, %v913
  %v1045 = vpack.c.bf16 %v930, %v912
  %v1046 = vpack.c.bf16 %v929, %v911
  %v1047 = vpack.c.bf16 %v928, %v910
  %v1048 = vpack.c.bf16 %v969, %v951
  %v1049 = vpack.c.bf16 %v968, %v950
  %v1050 = vpack.c.bf16 %v967, %v949
  %v1051 = vpack.c.bf16 %v966, %v948
  %v1052 = vpack.c.bf16 %v965, %v947
  %v1053 = vpack.c.bf16 %v964, %v946
  %v1054 = vpack.c.bf16 %v986, %v885
  %v1055 = vpack.c.bf16 %v985, %v886
  %v1056 = vpack.c.bf16 %v984, %v887
  %v1057 = vpack.c.bf16 %v983, %v888
  %v1058 = vpack.c.bf16 %v982, %v889
  %v1059 = vpack.c.bf16 %v987, %v890
  %v1060 = vpack.c.bf16 %v1022, %v1004
  %v1061 = vpack.c.bf16 %v1021, %v1003
  %v1062 = vpack.c.bf16 %v1020, %v1002
  %v1063 = vpack.c.bf16 %v1019, %v1001
  %v1064 = vpack.c.bf16 %v1018, %v1000
  %v1065 = vpack.c.bf16 %v1023, %v1005
  %v1066 = vpack.c.bf16 %v1040, %v1040
  %v1067 = vpack.c.bf16 %v1039, %v1039
  %v1068 = vpack.c.bf16 %v1038, %v1038
  %v1069 = vpack.c.bf16 %v1037, %v1037
  %v1070 = vpack.c.bf16 %v1036, %v1036
  %v1071 = vpack.c.bf16 %v1041, %v1041
  %v1073 = vsel %vm228, %v897, 0
  %v1076 = vsel %vm232, %v1066, 0
  %v1079 = vsel %vm232, %v1067, 0
  %v1082 = vsel %vm232, %v1068, 0
  %v1085 = vsel %vm232, %v1069, 0
  %v1088 = vsel %vm232, %v1070, 0
  %v1091 = vsel %vm232, %v1071, 0
  %1093 = vmatprep.subr.bf16.mxu0 %v1043
  %1094 = vmatpush1.bf16.msra.mxu0 %v1042
  %1095 = vmatprep.subr.bf16.mxu0 %v1049
  %1096 = vmatpush1.bf16.msra.mxu0 %v1048
  %1097 = vmatprep.subr.bf16.mxu0 %v1055
  %1098 = vmatpush1.bf16.msra.mxu0 %v1054
  %1099 = vmatprep.subr.bf16.mxu0 %v1061
  %1100 = vmatpush1.bf16.msra.mxu0 %v1060
  %1101 = vmatprep.subr.bf16.mxu0 %v1079
  %1102 = vmatpush1.bf16.msra.mxu0 %v1076
  %1103 = vmatprep.subr.bf16.mxu0 0
  %1104 = vmatpush1.bf16.msra.mxu0 0
  %1105 = vmatprep.subr.bf16.mxu0 0
  %1106 = vmatpush1.bf16.msra.mxu0 0
  %1107 = vmatprep.subr.bf16.mxu0 0
  %1108 = vmatpush1.bf16.msra.mxu0 0
  %1109 = vmatprep.subr.bf16.mxu0 0
  %1110 = vmatpush1.bf16.msra.mxu0 0
  %1111 = vmatprep.subr.bf16.mxu0 0
  %1112 = vmatpush1.bf16.msra.mxu0 0
  %1113 = vmatprep.subr.bf16.mxu0 0
  %1114 = vmatpush1.bf16.msra.mxu0 0
  %1115 = vmatprep.subr.bf16.mxu0 0
  %1116 = vmatpush1.bf16.msra.mxu0 0
  %1117 = vmatprep.subr.bf16.mxu0 0
  %1118 = vmatpush1.bf16.msra.mxu0 0
  %1119 = vmatprep.subr.bf16.mxu0 0
  %1120 = vmatpush1.bf16.msra.mxu0 0
  %1121 = vmatprep.subr.bf16.mxu0 0
  %1122 = vmatpush1.bf16.msra.mxu0 0
  %1123 = vmatprep.subr.bf16.mxu0 0
  %1124 = vmatpush1.bf16.msra.mxu0 0
  %1125 = vmatprep.mubr.bf16.mxu0 0
  %1126 = vmatmul.mubr.bf16.gmra.mrb[0].mxu0 %v1073
  %v1127 = vpop.f32.mrb[0].mxu0
  %v1128 = vadd.f32 0.0, %v1127
  %v1129 = vpop.f32.mrb[0].mxu0
  %v1130 = vadd.f32 0.0, %v1129
  %v1131 = vpop.f32.mrb[0].mxu0
  %v1132 = vpop.f32.mrb[0].mxu0
  %1133 = vdwg.mxu0
  %1134 = vmatprep.subr.bf16.mxu0 %v1045
  %1135 = vmatpush1.bf16.msra.mxu0 %v1044
  %1136 = vmatprep.subr.bf16.mxu0 %v1051
  %1137 = vmatpush1.bf16.msra.mxu0 %v1050
  %1138 = vmatprep.subr.bf16.mxu0 %v1057
  %1139 = vmatpush1.bf16.msra.mxu0 %v1056
  %1140 = vmatprep.subr.bf16.mxu0 %v1063
  %1141 = vmatpush1.bf16.msra.mxu0 %v1062
  %1142 = vmatprep.subr.bf16.mxu0 %v1085
  %1143 = vmatpush1.bf16.msra.mxu0 %v1082
  %1144 = vmatprep.subr.bf16.mxu0 0
  %1145 = vmatpush1.bf16.msra.mxu0 0
  %1146 = vmatprep.subr.bf16.mxu0 0
  %1147 = vmatpush1.bf16.msra.mxu0 0
  %1148 = vmatprep.subr.bf16.mxu0 0
  %1149 = vmatpush1.bf16.msra.mxu0 0
  %1150 = vmatprep.subr.bf16.mxu0 0
  %1151 = vmatpush1.bf16.msra.mxu0 0
  %1152 = vmatprep.subr.bf16.mxu0 0
  %1153 = vmatpush1.bf16.msra.mxu0 0
  %1154 = vmatprep.subr.bf16.mxu0 0
  %1155 = vmatpush1.bf16.msra.mxu0 0
  %1156 = vmatprep.subr.bf16.mxu0 0
  %1157 = vmatpush1.bf16.msra.mxu0 0
  %1158 = vmatprep.subr.bf16.mxu0 0
  %1159 = vmatpush1.bf16.msra.mxu0 0
  %1160 = vmatprep.subr.bf16.mxu0 0
  %1161 = vmatpush1.bf16.msra.mxu0 0
  %1162 = vmatprep.subr.bf16.mxu0 0
  %1163 = vmatpush1.bf16.msra.mxu0 0
  %1164 = vmatprep.subr.bf16.mxu0 0
  %1165 = vmatpush1.bf16.msra.mxu0 0
  %1166 = vmatprep.mubr.bf16.mxu0 0
  %1167 = vmatmul.mubr.bf16.gmra.mrb[0].mxu0 %v1073
  %v1168 = vpop.f32.mrb[0].mxu0
  %v1169 = vadd.f32 0.0, %v1168
  %v1170 = vpop.f32.mrb[0].mxu0
  %v1171 = vadd.f32 0.0, %v1170
  %v1172 = vpop.f32.mrb[0].mxu0
  %v1173 = vpop.f32.mrb[0].mxu0
  %1174 = vdwg.mxu0
  %1175 = vmatprep.subr.bf16.mxu0 %v1047
  %1176 = vmatpush1.bf16.msra.mxu0 %v1046
  %1177 = vmatprep.subr.bf16.mxu0 %v1053
  %1178 = vmatpush1.bf16.msra.mxu0 %v1052
  %1179 = vmatprep.subr.bf16.mxu0 %v1059
  %1180 = vmatpush1.bf16.msra.mxu0 %v1058
  %1181 = vmatprep.subr.bf16.mxu0 %v1065
  %1182 = vmatpush1.bf16.msra.mxu0 %v1064
  %1183 = vmatprep.subr.bf16.mxu0 %v1091
  %1184 = vmatpush1.bf16.msra.mxu0 %v1088
  %1185 = vmatprep.subr.bf16.mxu0 0
  %1186 = vmatpush1.bf16.msra.mxu0 0
  %1187 = vmatprep.subr.bf16.mxu0 0
  %1188 = vmatpush1.bf16.msra.mxu0 0
  %1189 = vmatprep.subr.bf16.mxu0 0
  %1190 = vmatpush1.bf16.msra.mxu0 0
  %1191 = vmatprep.subr.bf16.mxu0 0
  %1192 = vmatpush1.bf16.msra.mxu0 0
  %1193 = vmatprep.subr.bf16.mxu0 0
  %1194 = vmatpush1.bf16.msra.mxu0 0
  %1195 = vmatprep.subr.bf16.mxu0 0
  %1196 = vmatpush1.bf16.msra.mxu0 0
  %1197 = vmatprep.subr.bf16.mxu0 0
  %1198 = vmatpush1.bf16.msra.mxu0 0
  %1199 = vmatprep.subr.bf16.mxu0 0
  %1200 = vmatpush1.bf16.msra.mxu0 0
  %1201 = vmatprep.subr.bf16.mxu0 0
  %1202 = vmatpush1.bf16.msra.mxu0 0
  %1203 = vmatprep.subr.bf16.mxu0 0
  %1204 = vmatpush1.bf16.msra.mxu0 0
  %1205 = vmatprep.subr.bf16.mxu0 0
  %1206 = vmatpush1.bf16.msra.mxu0 0
  %1207 = vmatprep.mubr.bf16.mxu0 0
  %1208 = vmatmul.mubr.bf16.gmra.mrb[0].mxu0 %v1073
  %v1209 = vpop.f32.mrb[0].mxu0
  %v1210 = vadd.f32 0.0, %v1209
  %v1211 = vpop.f32.mrb[0].mxu0
  %v1212 = vadd.f32 0.0, %v1211
  %v1213 = vpop.f32.mrb[0].mxu0
  %v1214 = vpop.f32.mrb[0].mxu0
  %1215 = vdwg.mxu0
  %v1216 = vmul.f32 %v1128, %v378
  %v1217 = vmul.f32 %v1130, %v382
  %v1218 = vmul.f32 %v1169, %v386
  %v1219 = vmul.f32 %v1171, %v390
  %v1220 = vmul.f32 %v1210, %v394
  %v1221 = vmul.f32 %v1212, %v398
  %v1222 = vadd.f32 %v1216, %v1217
  %v1223 = vadd.f32 %v1222, %v1218
  %v1224 = vadd.f32 %v1223, %v1219
  %v1225 = vadd.f32 %v1224, %v1220
  %v1226 = vadd.f32 %v1225, %v1221
  %1227 = vadd.xlane.f32.xlu0 %v1226
  %v1228 = vpop.xlane.xlu0 %1227
  %v1229 = vmul.f32 %v1228, 0.001953125
  %v1230 = vmul.f32 %v1216, %v1128
  %v1231 = vmul.f32 %v1217, %v1130
  %v1232 = vmul.f32 %v1218, %v1169
  %v1233 = vmul.f32 %v1219, %v1171
  %v1234 = vmul.f32 %v1220, %v1210
  %v1235 = vmul.f32 %v1221, %v1212
  %v1236 = vadd.f32 %v1230, %v1231
  %v1237 = vadd.f32 %v1236, %v1232
  %v1238 = vadd.f32 %v1237, %v1233
  %v1239 = vadd.f32 %v1238, %v1234
  %v1240 = vadd.f32 %v1239, %v1235
  %1241 = vadd.xlane.f32.xlu0 %v1240
  %v1242 = vpop.xlane.xlu0 %1241
  %v1243 = vmul.f32 %v1242, 0.001953125
  %v1244 = vmul.f32 %v1229, %v1229
  %v1245 = vsub.f32 %v1243, %v1244
  %v1246 = vadd.f32 %v1245, 1e-05
  %v1247 = vrsqrt.pop %v1246
  %v1248 = vmul.f32 %v894, %v1247
  %v1249 = vsub.f32 %v1128, %v1229
  %v1250 = vsub.f32 %v1130, %v1229
  %v1251 = vsub.f32 %v1169, %v1229
  %v1252 = vsub.f32 %v1171, %v1229
  %v1253 = vsub.f32 %v1210, %v1229
  %v1254 = vsub.f32 %v1212, %v1229
  %1256 = vset.pattern.permute.xlu0 0
  %1257 = vperm.xlu0 %1256, %v1248
  %v1258 = vpop.permute.xlu0 %1257
  %v1260 = vmul.f32 %v1249, %v1258
  %v1261 = vmul.f32 %v1250, %v1258
  %v1262 = vmul.f32 %v1251, %v1258
  %v1263 = vmul.f32 %v1252, %v1258
  %v1264 = vmul.f32 %v1253, %v1258
  %v1265 = vmul.f32 %v1254, %v1258
  %1267 = vset.pattern.permute.xlu0 0
  %1268 = vperm.xlu0 %1267, %v896
  %v1269 = vpop.permute.xlu0 %1268
  %v1271 = vadd.f32 %v1260, %v1269
  %v1272 = vadd.f32 %v1261, %v1269
  %v1273 = vadd.f32 %v1262, %v1269
  %v1274 = vadd.f32 %v1263, %v1269
  %v1275 = vadd.f32 %v1264, %v1269
  %v1276 = vadd.f32 %v1265, %v1269
  %vm1277 = vcmp.ge.f32.partialorder %v1271, 0.0
  %vm1278 = vcmp.ge.f32.partialorder %v1272, 0.0
  %vm1279 = vcmp.ge.f32.partialorder %v1273, 0.0
  %vm1280 = vcmp.ge.f32.partialorder %v1274, 0.0
  %vm1281 = vcmp.ge.f32.partialorder %v1275, 0.0
  %vm1282 = vcmp.ge.f32.partialorder %v1276, 0.0
  %v1283 = vmul.f32 %v1271, 0.01
  %v1284 = vmul.f32 %v1272, 0.01
  %v1285 = vmul.f32 %v1273, 0.01
  %v1286 = vmul.f32 %v1274, 0.01
  %v1287 = vmul.f32 %v1275, 0.01
  %v1288 = vmul.f32 %v1276, 0.01
  %v1289 = vsel %vm1277, %v1271, %v1283
  %v1290 = vsel %vm1278, %v1272, %v1284
  %v1291 = vsel %vm1279, %v1273, %v1285
  %v1292 = vsel %vm1280, %v1274, %v1286
  %v1293 = vsel %vm1281, %v1275, %v1287
  %v1294 = vsel %vm1282, %v1276, %v1288
  %v1295 = vmul.f32 %v1289, %v378
  %v1296 = vmul.f32 %v1290, %v382
  %v1297 = vmul.f32 %v1291, %v386
  %v1298 = vmul.f32 %v1292, %v390
  %v1299 = vmul.f32 %v1293, %v394
  %v1300 = vmul.f32 %v1294, %v398
  %1301 = vrot.lane.b32.xlu0 %v1295, 19
  %v1302 = vpop.permute.xlu0 %1301
  %1303 = vrot.lane.b32.xlu0 %v1296, 19
  %v1304 = vpop.permute.xlu0 %1303
  %1305 = vrot.lane.b32.xlu0 %v1297, 19
  %v1306 = vpop.permute.xlu0 %1305
  %1307 = vrot.lane.b32.xlu0 %v1298, 19
  %v1308 = vpop.permute.xlu0 %1307
  %1309 = vrot.lane.b32.xlu0 %v1299, 19
  %v1310 = vpop.permute.xlu0 %1309
  %1311 = vrot.lane.b32.xlu0 %v1300, 19
  %v1312 = vpop.permute.xlu0 %1311
  %v1313 = vsel %vm58, %v1310, %v1312
  %v1314 = vsel %vm58, %v1308, %v1310
  %v1315 = vsel %vm58, %v1306, %v1308
  %v1316 = vsel %vm58, %v1304, %v1306
  %v1317 = vsel %vm58, %v1302, %v1304
  %v1318 = vsel %vm58, %v1312, %v1302
  %1319 = vrot.lane.b32.xlu0 %v1295, 18
  %v1320 = vpop.permute.xlu0 %1319
  %1321 = vrot.lane.b32.xlu0 %v1296, 18
  %v1322 = vpop.permute.xlu0 %1321
  %1323 = vrot.lane.b32.xlu0 %v1297, 18
  %v1324 = vpop.permute.xlu0 %1323
  %1325 = vrot.lane.b32.xlu0 %v1298, 18
  %v1326 = vpop.permute.xlu0 %1325
  %1327 = vrot.lane.b32.xlu0 %v1299, 18
  %v1328 = vpop.permute.xlu0 %1327
  %1329 = vrot.lane.b32.xlu0 %v1300, 18
  %v1330 = vpop.permute.xlu0 %1329
  %v1331 = vsel %vm77, %v1328, %v1330
  %v1332 = vsel %vm77, %v1326, %v1328
  %v1333 = vsel %vm77, %v1324, %v1326
  %v1334 = vsel %vm77, %v1322, %v1324
  %v1335 = vsel %vm77, %v1320, %v1322
  %v1336 = vsel %vm77, %v1330, %v1320
  %1337 = vrot.lane.b32.xlu0 %v1295, 17
  %v1338 = vpop.permute.xlu0 %1337
  %1339 = vrot.lane.b32.xlu0 %v1296, 17
  %v1340 = vpop.permute.xlu0 %1339
  %1341 = vrot.lane.b32.xlu0 %v1297, 17
  %v1342 = vpop.permute.xlu0 %1341
  %1343 = vrot.lane.b32.xlu0 %v1298, 17
  %v1344 = vpop.permute.xlu0 %1343
  %1345 = vrot.lane.b32.xlu0 %v1299, 17
  %v1346 = vpop.permute.xlu0 %1345
  %1347 = vrot.lane.b32.xlu0 %v1300, 17
  %v1348 = vpop.permute.xlu0 %1347
  %v1349 = vsel %vm96, %v1346, %v1348
  %v1350 = vsel %vm96, %v1344, %v1346
  %v1351 = vsel %vm96, %v1342, %v1344
  %v1352 = vsel %vm96, %v1340, %v1342
  %v1353 = vsel %vm96, %v1338, %v1340
  %v1354 = vsel %vm96, %v1348, %v1338
  %1355 = vrot.lane.b32.xlu0 %v1295, 1
  %v1356 = vpop.permute.xlu0 %1355
  %1357 = vrot.lane.b32.xlu0 %v1296, 1
  %v1358 = vpop.permute.xlu0 %1357
  %1359 = vrot.lane.b32.xlu0 %v1297, 1
  %v1360 = vpop.permute.xlu0 %1359
  %1361 = vrot.lane.b32.xlu0 %v1298, 1
  %v1362 = vpop.permute.xlu0 %1361
  %1363 = vrot.lane.b32.xlu0 %v1299, 1
  %v1364 = vpop.permute.xlu0 %1363
  %1365 = vrot.lane.b32.xlu0 %v1300, 1
  %v1366 = vpop.permute.xlu0 %1365
  %v1367 = vsel %vm115, %v1364, %v1366
  %v1368 = vsel %vm115, %v1362, %v1364
  %v1369 = vsel %vm115, %v1360, %v1362
  %v1370 = vsel %vm115, %v1358, %v1360
  %v1371 = vsel %vm115, %v1356, %v1358
  %v1372 = vsel %vm115, %v1366, %v1356
  %1373 = vrot.lane.b32.xlu0 %v1295, 127
  %v1374 = vpop.permute.xlu0 %1373
  %1375 = vrot.lane.b32.xlu0 %v1296, 127
  %v1376 = vpop.permute.xlu0 %1375
  %1377 = vrot.lane.b32.xlu0 %v1297, 127
  %v1378 = vpop.permute.xlu0 %1377
  %1379 = vrot.lane.b32.xlu0 %v1298, 127
  %v1380 = vpop.permute.xlu0 %1379
  %1381 = vrot.lane.b32.xlu0 %v1299, 127
  %v1382 = vpop.permute.xlu0 %1381
  %1383 = vrot.lane.b32.xlu0 %v1300, 127
  %v1384 = vpop.permute.xlu0 %1383
  %v1385 = vsel %vm134, %v1382, %v1384
  %v1386 = vsel %vm134, %v1380, %v1382
  %v1387 = vsel %vm134, %v1378, %v1380
  %v1388 = vsel %vm134, %v1376, %v1378
  %v1389 = vsel %vm134, %v1374, %v1376
  %v1390 = vsel %vm134, %v1384, %v1374
  %1391 = vrot.lane.b32.xlu0 %v1295, 111
  %v1392 = vpop.permute.xlu0 %1391
  %1393 = vrot.lane.b32.xlu0 %v1296, 111
  %v1394 = vpop.permute.xlu0 %1393
  %1395 = vrot.lane.b32.xlu0 %v1297, 111
  %v1396 = vpop.permute.xlu0 %1395
  %1397 = vrot.lane.b32.xlu0 %v1298, 111
  %v1398 = vpop.permute.xlu0 %1397
  %1399 = vrot.lane.b32.xlu0 %v1299, 111
  %v1400 = vpop.permute.xlu0 %1399
  %1401 = vrot.lane.b32.xlu0 %v1300, 111
  %v1402 = vpop.permute.xlu0 %1401
  %v1403 = vsel %vm153, %v1400, %v1402
  %v1404 = vsel %vm153, %v1398, %v1400
  %v1405 = vsel %vm153, %v1396, %v1398
  %v1406 = vsel %vm153, %v1394, %v1396
  %v1407 = vsel %vm153, %v1392, %v1394
  %v1408 = vsel %vm153, %v1402, %v1392
  %1409 = vrot.lane.b32.xlu0 %v1295, 110
  %v1410 = vpop.permute.xlu0 %1409
  %1411 = vrot.lane.b32.xlu0 %v1296, 110
  %v1412 = vpop.permute.xlu0 %1411
  %1413 = vrot.lane.b32.xlu0 %v1297, 110
  %v1414 = vpop.permute.xlu0 %1413
  %1415 = vrot.lane.b32.xlu0 %v1298, 110
  %v1416 = vpop.permute.xlu0 %1415
  %1417 = vrot.lane.b32.xlu0 %v1299, 110
  %v1418 = vpop.permute.xlu0 %1417
  %1419 = vrot.lane.b32.xlu0 %v1300, 110
  %v1420 = vpop.permute.xlu0 %1419
  %v1421 = vsel %vm172, %v1418, %v1420
  %v1422 = vsel %vm172, %v1416, %v1418
  %v1423 = vsel %vm172, %v1414, %v1416
  %v1424 = vsel %vm172, %v1412, %v1414
  %v1425 = vsel %vm172, %v1410, %v1412
  %v1426 = vsel %vm172, %v1420, %v1410
  %1427 = vrot.lane.b32.xlu0 %v1295, 109
  %v1428 = vpop.permute.xlu0 %1427
  %1429 = vrot.lane.b32.xlu0 %v1296, 109
  %v1430 = vpop.permute.xlu0 %1429
  %1431 = vrot.lane.b32.xlu0 %v1297, 109
  %v1432 = vpop.permute.xlu0 %1431
  %1433 = vrot.lane.b32.xlu0 %v1298, 109
  %v1434 = vpop.permute.xlu0 %1433
  %1435 = vrot.lane.b32.xlu0 %v1299, 109
  %v1436 = vpop.permute.xlu0 %1435
  %1437 = vrot.lane.b32.xlu0 %v1300, 109
  %v1438 = vpop.permute.xlu0 %1437
  %v1439 = vsel %vm191, %v1436, %v1438
  %v1440 = vsel %vm191, %v1434, %v1436
  %v1441 = vsel %vm191, %v1432, %v1434
  %v1442 = vsel %vm191, %v1430, %v1432
  %v1443 = vsel %vm191, %v1428, %v1430
  %v1444 = vsel %vm191, %v1438, %v1428
  %v1445 = vpack.c.bf16 %v1336, %v1318
  %v1446 = vpack.c.bf16 %v1335, %v1317
  %v1447 = vpack.c.bf16 %v1334, %v1316
  %v1448 = vpack.c.bf16 %v1333, %v1315
  %v1449 = vpack.c.bf16 %v1332, %v1314
  %v1450 = vpack.c.bf16 %v1331, %v1313
  %v1451 = vpack.c.bf16 %v1372, %v1354
  %v1452 = vpack.c.bf16 %v1371, %v1353
  %v1453 = vpack.c.bf16 %v1370, %v1352
  %v1454 = vpack.c.bf16 %v1369, %v1351
  %v1455 = vpack.c.bf16 %v1368, %v1350
  %v1456 = vpack.c.bf16 %v1367, %v1349
  %v1457 = vpack.c.bf16 %v1389, %v1295
  %v1458 = vpack.c.bf16 %v1388, %v1296
  %v1459 = vpack.c.bf16 %v1387, %v1297
  %v1460 = vpack.c.bf16 %v1386, %v1298
  %v1461 = vpack.c.bf16 %v1385, %v1299
  %v1462 = vpack.c.bf16 %v1390, %v1300
  %v1463 = vpack.c.bf16 %v1425, %v1407
  %v1464 = vpack.c.bf16 %v1424, %v1406
  %v1465 = vpack.c.bf16 %v1423, %v1405
  %v1466 = vpack.c.bf16 %v1422, %v1404
  %v1467 = vpack.c.bf16 %v1421, %v1403
  %v1468 = vpack.c.bf16 %v1426, %v1408
  %v1469 = vpack.c.bf16 %v1443, %v1443
  %v1470 = vpack.c.bf16 %v1442, %v1442
  %v1471 = vpack.c.bf16 %v1441, %v1441
  %v1472 = vpack.c.bf16 %v1440, %v1440
  %v1473 = vpack.c.bf16 %v1439, %v1439
  %v1474 = vpack.c.bf16 %v1444, %v1444
  %v1476 = vsel %vm232, %v1469, 0
  %v1479 = vsel %vm232, %v1470, 0
  %v1482 = vsel %vm232, %v1471, 0
  %v1485 = vsel %vm232, %v1472, 0
  %v1488 = vsel %vm232, %v1473, 0
  %v1491 = vsel %vm232, %v1474, 0
  %1493 = vmatprep.subr.bf16.mxu0 %v1446
  %1494 = vmatpush1.bf16.msra.mxu0 %v1445
  %1495 = vmatprep.subr.bf16.mxu0 %v1452
  %1496 = vmatpush1.bf16.msra.mxu0 %v1451
  %1497 = vmatprep.subr.bf16.mxu0 %v1458
  %1498 = vmatpush1.bf16.msra.mxu0 %v1457
  %1499 = vmatprep.subr.bf16.mxu0 %v1464
  %1500 = vmatpush1.bf16.msra.mxu0 %v1463
  %1501 = vmatprep.subr.bf16.mxu0 %v1479
  %1502 = vmatpush1.bf16.msra.mxu0 %v1476
  %1503 = vmatprep.subr.bf16.mxu0 0
  %1504 = vmatpush1.bf16.msra.mxu0 0
  %1505 = vmatprep.subr.bf16.mxu0 0
  %1506 = vmatpush1.bf16.msra.mxu0 0
  %1507 = vmatprep.subr.bf16.mxu0 0
  %1508 = vmatpush1.bf16.msra.mxu0 0
  %1509 = vmatprep.subr.bf16.mxu0 0
  %1510 = vmatpush1.bf16.msra.mxu0 0
  %1511 = vmatprep.subr.bf16.mxu0 0
  %1512 = vmatpush1.bf16.msra.mxu0 0
  %1513 = vmatprep.subr.bf16.mxu0 0
  %1514 = vmatpush1.bf16.msra.mxu0 0
  %1515 = vmatprep.subr.bf16.mxu0 0
  %1516 = vmatpush1.bf16.msra.mxu0 0
  %1517 = vmatprep.subr.bf16.mxu0 0
  %1518 = vmatpush1.bf16.msra.mxu0 0
  %1519 = vmatprep.subr.bf16.mxu0 0
  %1520 = vmatpush1.bf16.msra.mxu0 0
  %1521 = vmatprep.subr.bf16.mxu0 0
  %1522 = vmatpush1.bf16.msra.mxu0 0
  %1523 = vmatprep.subr.bf16.mxu0 0
  %1524 = vmatpush1.bf16.msra.mxu0 0
  %1525 = vmatprep.mubr.bf16.mxu0 0
  %1526 = vmatmul.mubr.bf16.gmra.mrb[0].mxu0 %v1073
  %v1527 = vpop.f32.mrb[0].mxu0
  %v1528 = vadd.f32 0.0, %v1527
  %v1529 = vpop.f32.mrb[0].mxu0
  %v1530 = vadd.f32 0.0, %v1529
  %v1531 = vpop.f32.mrb[0].mxu0
  %v1532 = vpop.f32.mrb[0].mxu0
  %1533 = vdwg.mxu0
  %1534 = vmatprep.subr.bf16.mxu0 %v1448
  %1535 = vmatpush1.bf16.msra.mxu0 %v1447
  %1536 = vmatprep.subr.bf16.mxu0 %v1454
  %1537 = vmatpush1.bf16.msra.mxu0 %v1453
  %1538 = vmatprep.subr.bf16.mxu0 %v1460
  %1539 = vmatpush1.bf16.msra.mxu0 %v1459
  %1540 = vmatprep.subr.bf16.mxu0 %v1466
  %1541 = vmatpush1.bf16.msra.mxu0 %v1465
  %1542 = vmatprep.subr.bf16.mxu0 %v1485
  %1543 = vmatpush1.bf16.msra.mxu0 %v1482
  %1544 = vmatprep.subr.bf16.mxu0 0
  %1545 = vmatpush1.bf16.msra.mxu0 0
  %1546 = vmatprep.subr.bf16.mxu0 0
  %1547 = vmatpush1.bf16.msra.mxu0 0
  %1548 = vmatprep.subr.bf16.mxu0 0
  %1549 = vmatpush1.bf16.msra.mxu0 0
  %1550 = vmatprep.subr.bf16.mxu0 0
  %1551 = vmatpush1.bf16.msra.mxu0 0
  %1552 = vmatprep.subr.bf16.mxu0 0
  %1553 = vmatpush1.bf16.msra.mxu0 0
  %1554 = vmatprep.subr.bf16.mxu0 0
  %1555 = vmatpush1.bf16.msra.mxu0 0
  %1556 = vmatprep.subr.bf16.mxu0 0
  %1557 = vmatpush1.bf16.msra.mxu0 0
  %1558 = vmatprep.subr.bf16.mxu0 0
  %1559 = vmatpush1.bf16.msra.mxu0 0
  %1560 = vmatprep.subr.bf16.mxu0 0
  %1561 = vmatpush1.bf16.msra.mxu0 0
  %1562 = vmatprep.subr.bf16.mxu0 0
  %1563 = vmatpush1.bf16.msra.mxu0 0
  %1564 = vmatprep.subr.bf16.mxu0 0
  %1565 = vmatpush1.bf16.msra.mxu0 0
  %1566 = vmatprep.mubr.bf16.mxu0 0
  %1567 = vmatmul.mubr.bf16.gmra.mrb[0].mxu0 %v1073
  %v1568 = vpop.f32.mrb[0].mxu0
  %v1569 = vadd.f32 0.0, %v1568
  %v1570 = vpop.f32.mrb[0].mxu0
  %v1571 = vadd.f32 0.0, %v1570
  %v1572 = vpop.f32.mrb[0].mxu0
  %v1573 = vpop.f32.mrb[0].mxu0
  %1574 = vdwg.mxu0
  %1575 = vmatprep.subr.bf16.mxu0 %v1450
  %1576 = vmatpush1.bf16.msra.mxu0 %v1449
  %1577 = vmatprep.subr.bf16.mxu0 %v1456
  %1578 = vmatpush1.bf16.msra.mxu0 %v1455
  %1579 = vmatprep.subr.bf16.mxu0 %v1462
  %1580 = vmatpush1.bf16.msra.mxu0 %v1461
  %1581 = vmatprep.subr.bf16.mxu0 %v1468
  %1582 = vmatpush1.bf16.msra.mxu0 %v1467
  %1583 = vmatprep.subr.bf16.mxu0 %v1491
  %1584 = vmatpush1.bf16.msra.mxu0 %v1488
  %1585 = vmatprep.subr.bf16.mxu0 0
  %1586 = vmatpush1.bf16.msra.mxu0 0
  %1587 = vmatprep.subr.bf16.mxu0 0
  %1588 = vmatpush1.bf16.msra.mxu0 0
  %1589 = vmatprep.subr.bf16.mxu0 0
  %1590 = vmatpush1.bf16.msra.mxu0 0
  %1591 = vmatprep.subr.bf16.mxu0 0
  %1592 = vmatpush1.bf16.msra.mxu0 0
  %1593 = vmatprep.subr.bf16.mxu0 0
  %1594 = vmatpush1.bf16.msra.mxu0 0
  %1595 = vmatprep.subr.bf16.mxu0 0
  %1596 = vmatpush1.bf16.msra.mxu0 0
  %1597 = vmatprep.subr.bf16.mxu0 0
  %1598 = vmatpush1.bf16.msra.mxu0 0
  %1599 = vmatprep.subr.bf16.mxu0 0
  %1600 = vmatpush1.bf16.msra.mxu0 0
  %1601 = vmatprep.subr.bf16.mxu0 0
  %1602 = vmatpush1.bf16.msra.mxu0 0
  %1603 = vmatprep.subr.bf16.mxu0 0
  %1604 = vmatpush1.bf16.msra.mxu0 0
  %1605 = vmatprep.subr.bf16.mxu0 0
  %1606 = vmatpush1.bf16.msra.mxu0 0
  %1607 = vmatprep.mubr.bf16.mxu0 0
  %1608 = vmatmul.mubr.bf16.gmra.mrb[0].mxu0 %v1073
  %v1609 = vpop.f32.mrb[0].mxu0
  %v1610 = vadd.f32 0.0, %v1609
  %v1611 = vpop.f32.mrb[0].mxu0
  %v1612 = vadd.f32 0.0, %v1611
  %v1613 = vpop.f32.mrb[0].mxu0
  %v1614 = vpop.f32.mrb[0].mxu0
  %1615 = vdwg.mxu0
  %v1616 = vmul.f32 %v1528, %v378
  %v1617 = vmul.f32 %v1530, %v382
  %v1618 = vmul.f32 %v1569, %v386
  %v1619 = vmul.f32 %v1571, %v390
  %v1620 = vmul.f32 %v1610, %v394
  %v1621 = vmul.f32 %v1612, %v398
  %v1622 = vadd.f32 %v1616, %v1617
  %v1623 = vadd.f32 %v1622, %v1618
  %v1624 = vadd.f32 %v1623, %v1619
  %v1625 = vadd.f32 %v1624, %v1620
  %v1626 = vadd.f32 %v1625, %v1621
  %1627 = vadd.xlane.f32.xlu0 %v1626
  %v1628 = vpop.xlane.xlu0 %1627
  %v1629 = vmul.f32 %v1628, 0.001953125
  %v1630 = vmul.f32 %v1616, %v1528
  %v1631 = vmul.f32 %v1617, %v1530
  %v1632 = vmul.f32 %v1618, %v1569
  %v1633 = vmul.f32 %v1619, %v1571
  %v1634 = vmul.f32 %v1620, %v1610
  %v1635 = vmul.f32 %v1621, %v1612
  %v1636 = vadd.f32 %v1630, %v1631
  %v1637 = vadd.f32 %v1636, %v1632
  %v1638 = vadd.f32 %v1637, %v1633
  %v1639 = vadd.f32 %v1638, %v1634
  %v1640 = vadd.f32 %v1639, %v1635
  %1641 = vadd.xlane.f32.xlu0 %v1640
  %v1642 = vpop.xlane.xlu0 %1641
  %v1643 = vmul.f32 %v1642, 0.001953125
  %v1644 = vmul.f32 %v1629, %v1629
  %v1645 = vsub.f32 %v1643, %v1644
  %v1646 = vadd.f32 %v1645, 1e-05
  %v1647 = vrsqrt.pop %v1646
  %v1648 = vmul.f32 %v894, %v1647
  %v1649 = vsub.f32 %v1528, %v1629
  %v1650 = vsub.f32 %v1530, %v1629
  %v1651 = vsub.f32 %v1569, %v1629
  %v1652 = vsub.f32 %v1571, %v1629
  %v1653 = vsub.f32 %v1610, %v1629
  %v1654 = vsub.f32 %v1612, %v1629
  %1656 = vset.pattern.permute.xlu0 0
  %1657 = vperm.xlu0 %1656, %v1648
  %v1658 = vpop.permute.xlu0 %1657
  %v1660 = vmul.f32 %v1649, %v1658
  %v1661 = vmul.f32 %v1650, %v1658
  %v1662 = vmul.f32 %v1651, %v1658
  %v1663 = vmul.f32 %v1652, %v1658
  %v1664 = vmul.f32 %v1653, %v1658
  %v1665 = vmul.f32 %v1654, %v1658
  %v1666 = vadd.f32 %v1660, %v1269
  %v1667 = vadd.f32 %v1661, %v1269
  %v1668 = vadd.f32 %v1662, %v1269
  %v1669 = vadd.f32 %v1663, %v1269
  %v1670 = vadd.f32 %v1664, %v1269
  %v1671 = vadd.f32 %v1665, %v1269
  %vm1672 = vcmp.ge.f32.partialorder %v1666, 0.0
  %vm1673 = vcmp.ge.f32.partialorder %v1667, 0.0
  %vm1674 = vcmp.ge.f32.partialorder %v1668, 0.0
  %vm1675 = vcmp.ge.f32.partialorder %v1669, 0.0
  %vm1676 = vcmp.ge.f32.partialorder %v1670, 0.0
  %vm1677 = vcmp.ge.f32.partialorder %v1671, 0.0
  %v1678 = vmul.f32 %v1666, 0.01
  %v1679 = vmul.f32 %v1667, 0.01
  %v1680 = vmul.f32 %v1668, 0.01
  %v1681 = vmul.f32 %v1669, 0.01
  %v1682 = vmul.f32 %v1670, 0.01
  %v1683 = vmul.f32 %v1671, 0.01
  %v1684 = vsel %vm1672, %v1666, %v1678
  %v1685 = vsel %vm1673, %v1667, %v1679
  %v1686 = vsel %vm1674, %v1668, %v1680
  %v1687 = vsel %vm1675, %v1669, %v1681
  %v1688 = vsel %vm1676, %v1670, %v1682
  %v1689 = vsel %vm1677, %v1671, %v1683
  %v1690 = vmul.f32 %v1684, %v378
  %v1691 = vmul.f32 %v1685, %v382
  %v1692 = vmul.f32 %v1686, %v386
  %v1693 = vmul.f32 %v1687, %v390
  %v1694 = vmul.f32 %v1688, %v394
  %v1695 = vmul.f32 %v1689, %v398
  %v1696 = vadd.f32 %v885, %v1690
  %v1697 = vadd.f32 %v886, %v1691
  %v1698 = vadd.f32 %v887, %v1692
  %v1699 = vadd.f32 %v888, %v1693
  %v1700 = vadd.f32 %v889, %v1694
  %v1701 = vadd.f32 %v890, %v1695
  %v1702 = vld [vmem:[%s4] sm:$0xff]
  %v1703 = vpack.c.bf16 %v1702, %v1702
  %1704 = vrot.lane.b32.xlu0 %v1696, 19
  %v1705 = vpop.permute.xlu0 %1704
  %1706 = vrot.lane.b32.xlu0 %v1697, 19
  %v1707 = vpop.permute.xlu0 %1706
  %1708 = vrot.lane.b32.xlu0 %v1698, 19
  %v1709 = vpop.permute.xlu0 %1708
  %1710 = vrot.lane.b32.xlu0 %v1699, 19
  %v1711 = vpop.permute.xlu0 %1710
  %1712 = vrot.lane.b32.xlu0 %v1700, 19
  %v1713 = vpop.permute.xlu0 %1712
  %1714 = vrot.lane.b32.xlu0 %v1701, 19
  %v1715 = vpop.permute.xlu0 %1714
  %v1716 = vsel %vm58, %v1713, %v1715
  %v1717 = vsel %vm58, %v1711, %v1713
  %v1718 = vsel %vm58, %v1709, %v1711
  %v1719 = vsel %vm58, %v1707, %v1709
  %v1720 = vsel %vm58, %v1705, %v1707
  %v1721 = vsel %vm58, %v1715, %v1705
  %1722 = vrot.lane.b32.xlu0 %v1696, 18
  %v1723 = vpop.permute.xlu0 %1722
  %1724 = vrot.lane.b32.xlu0 %v1697, 18
  %v1725 = vpop.permute.xlu0 %1724
  %1726 = vrot.lane.b32.xlu0 %v1698, 18
  %v1727 = vpop.permute.xlu0 %1726
  %1728 = vrot.lane.b32.xlu0 %v1699, 18
  %v1729 = vpop.permute.xlu0 %1728
  %1730 = vrot.lane.b32.xlu0 %v1700, 18
  %v1731 = vpop.permute.xlu0 %1730
  %1732 = vrot.lane.b32.xlu0 %v1701, 18
  %v1733 = vpop.permute.xlu0 %1732
  %v1734 = vsel %vm77, %v1731, %v1733
  %v1735 = vsel %vm77, %v1729, %v1731
  %v1736 = vsel %vm77, %v1727, %v1729
  %v1737 = vsel %vm77, %v1725, %v1727
  %v1738 = vsel %vm77, %v1723, %v1725
  %v1739 = vsel %vm77, %v1733, %v1723
  %1740 = vrot.lane.b32.xlu0 %v1696, 17
  %v1741 = vpop.permute.xlu0 %1740
  %1742 = vrot.lane.b32.xlu0 %v1697, 17
  %v1743 = vpop.permute.xlu0 %1742
  %1744 = vrot.lane.b32.xlu0 %v1698, 17
  %v1745 = vpop.permute.xlu0 %1744
  %1746 = vrot.lane.b32.xlu0 %v1699, 17
  %v1747 = vpop.permute.xlu0 %1746
  %1748 = vrot.lane.b32.xlu0 %v1700, 17
  %v1749 = vpop.permute.xlu0 %1748
  %1750 = vrot.lane.b32.xlu0 %v1701, 17
  %v1751 = vpop.permute.xlu0 %1750
  %v1752 = vsel %vm96, %v1749, %v1751
  %v1753 = vsel %vm96, %v1747, %v1749
  %v1754 = vsel %vm96, %v1745, %v1747
  %v1755 = vsel %vm96, %v1743, %v1745
  %v1756 = vsel %vm96, %v1741, %v1743
  %v1757 = vsel %vm96, %v1751, %v1741
  %1758 = vrot.lane.b32.xlu0 %v1696, 1
  %v1759 = vpop.permute.xlu0 %1758
  %1760 = vrot.lane.b32.xlu0 %v1697, 1
  %v1761 = vpop.permute.xlu0 %1760
  %1762 = vrot.lane.b32.xlu0 %v1698, 1
  %v1763 = vpop.permute.xlu0 %1762
  %1764 = vrot.lane.b32.xlu0 %v1699, 1
  %v1765 = vpop.permute.xlu0 %1764
  %1766 = vrot.lane.b32.xlu0 %v1700, 1
  %v1767 = vpop.permute.xlu0 %1766
  %1768 = vrot.lane.b32.xlu0 %v1701, 1
  %v1769 = vpop.permute.xlu0 %1768
  %v1770 = vsel %vm115, %v1767, %v1769
  %v1771 = vsel %vm115, %v1765, %v1767
  %v1772 = vsel %vm115, %v1763, %v1765
  %v1773 = vsel %vm115, %v1761, %v1763
  %v1774 = vsel %vm115, %v1759, %v1761
  %v1775 = vsel %vm115, %v1769, %v1759
  %1776 = vrot.lane.b32.xlu0 %v1696, 127
  %v1777 = vpop.permute.xlu0 %1776
  %1778 = vrot.lane.b32.xlu0 %v1697, 127
  %v1779 = vpop.permute.xlu0 %1778
  %1780 = vrot.lane.b32.xlu0 %v1698, 127
  %v1781 = vpop.permute.xlu0 %1780
  %1782 = vrot.lane.b32.xlu0 %v1699, 127
  %v1783 = vpop.permute.xlu0 %1782
  %1784 = vrot.lane.b32.xlu0 %v1700, 127
  %v1785 = vpop.permute.xlu0 %1784
  %1786 = vrot.lane.b32.xlu0 %v1701, 127
  %v1787 = vpop.permute.xlu0 %1786
  %v1788 = vsel %vm134, %v1785, %v1787
  %v1789 = vsel %vm134, %v1783, %v1785
  %v1790 = vsel %vm134, %v1781, %v1783
  %v1791 = vsel %vm134, %v1779, %v1781
  %v1792 = vsel %vm134, %v1777, %v1779
  %v1793 = vsel %vm134, %v1787, %v1777
  %1794 = vrot.lane.b32.xlu0 %v1696, 111
  %v1795 = vpop.permute.xlu0 %1794
  %1796 = vrot.lane.b32.xlu0 %v1697, 111
  %v1797 = vpop.permute.xlu0 %1796
  %1798 = vrot.lane.b32.xlu0 %v1698, 111
  %v1799 = vpop.permute.xlu0 %1798
  %1800 = vrot.lane.b32.xlu0 %v1699, 111
  %v1801 = vpop.permute.xlu0 %1800
  %1802 = vrot.lane.b32.xlu0 %v1700, 111
  %v1803 = vpop.permute.xlu0 %1802
  %1804 = vrot.lane.b32.xlu0 %v1701, 111
  %v1805 = vpop.permute.xlu0 %1804
  %v1806 = vsel %vm153, %v1803, %v1805
  %v1807 = vsel %vm153, %v1801, %v1803
  %v1808 = vsel %vm153, %v1799, %v1801
  %v1809 = vsel %vm153, %v1797, %v1799
  %v1810 = vsel %vm153, %v1795, %v1797
  %v1811 = vsel %vm153, %v1805, %v1795
  %1812 = vrot.lane.b32.xlu0 %v1696, 110
  %v1813 = vpop.permute.xlu0 %1812
  %1814 = vrot.lane.b32.xlu0 %v1697, 110
  %v1815 = vpop.permute.xlu0 %1814
  %1816 = vrot.lane.b32.xlu0 %v1698, 110
  %v1817 = vpop.permute.xlu0 %1816
  %1818 = vrot.lane.b32.xlu0 %v1699, 110
  %v1819 = vpop.permute.xlu0 %1818
  %1820 = vrot.lane.b32.xlu0 %v1700, 110
  %v1821 = vpop.permute.xlu0 %1820
  %1822 = vrot.lane.b32.xlu0 %v1701, 110
  %v1823 = vpop.permute.xlu0 %1822
  %v1824 = vsel %vm172, %v1821, %v1823
  %v1825 = vsel %vm172, %v1819, %v1821
  %v1826 = vsel %vm172, %v1817, %v1819
  %v1827 = vsel %vm172, %v1815, %v1817
  %v1828 = vsel %vm172, %v1813, %v1815
  %v1829 = vsel %vm172, %v1823, %v1813
  %1830 = vrot.lane.b32.xlu0 %v1696, 109
  %v1831 = vpop.permute.xlu0 %1830
  %1832 = vrot.lane.b32.xlu0 %v1697, 109
  %v1833 = vpop.permute.xlu0 %1832
  %1834 = vrot.lane.b32.xlu0 %v1698, 109
  %v1835 = vpop.permute.xlu0 %1834
  %1836 = vrot.lane.b32.xlu0 %v1699, 109
  %v1837 = vpop.permute.xlu0 %1836
  %1838 = vrot.lane.b32.xlu0 %v1700, 109
  %v1839 = vpop.permute.xlu0 %1838
  %1840 = vrot.lane.b32.xlu0 %v1701, 109
  %v1841 = vpop.permute.xlu0 %1840
  %v1842 = vsel %vm191, %v1839, %v1841
  %v1843 = vsel %vm191, %v1837, %v1839
  %v1844 = vsel %vm191, %v1835, %v1837
  %v1845 = vsel %vm191, %v1833, %v1835
  %v1846 = vsel %vm191, %v1831, %v1833
  %v1847 = vsel %vm191, %v1841, %v1831
  %v1848 = vpack.c.bf16 %v1739, %v1721
  %v1849 = vpack.c.bf16 %v1738, %v1720
  %v1850 = vpack.c.bf16 %v1737, %v1719
  %v1851 = vpack.c.bf16 %v1736, %v1718
  %v1852 = vpack.c.bf16 %v1735, %v1717
  %v1853 = vpack.c.bf16 %v1734, %v1716
  %v1854 = vpack.c.bf16 %v1775, %v1757
  %v1855 = vpack.c.bf16 %v1774, %v1756
  %v1856 = vpack.c.bf16 %v1773, %v1755
  %v1857 = vpack.c.bf16 %v1772, %v1754
  %v1858 = vpack.c.bf16 %v1771, %v1753
  %v1859 = vpack.c.bf16 %v1770, %v1752
  %v1860 = vpack.c.bf16 %v1792, %v1696
  %v1861 = vpack.c.bf16 %v1791, %v1697
  %v1862 = vpack.c.bf16 %v1790, %v1698
  %v1863 = vpack.c.bf16 %v1789, %v1699
  %v1864 = vpack.c.bf16 %v1788, %v1700
  %v1865 = vpack.c.bf16 %v1793, %v1701
  %v1866 = vpack.c.bf16 %v1828, %v1810
  %v1867 = vpack.c.bf16 %v1827, %v1809
  %v1868 = vpack.c.bf16 %v1826, %v1808
  %v1869 = vpack.c.bf16 %v1825, %v1807
  %v1870 = vpack.c.bf16 %v1824, %v1806
  %v1871 = vpack.c.bf16 %v1829, %v1811
  %v1872 = vpack.c.bf16 %v1846, %v1846
  %v1873 = vpack.c.bf16 %v1845, %v1845
  %v1874 = vpack.c.bf16 %v1844, %v1844
  %v1875 = vpack.c.bf16 %v1843, %v1843
  %v1876 = vpack.c.bf16 %v1842, %v1842
  %v1877 = vpack.c.bf16 %v1847, %v1847
  %v1879 = vsel %vm228, %v1703, 0
  %v1882 = vsel %vm232, %v1872, 0
  %v1885 = vsel %vm232, %v1873, 0
  %v1888 = vsel %vm232, %v1874, 0
  %v1891 = vsel %vm232, %v1875, 0
  %v1894 = vsel %vm232, %v1876, 0
  %v1897 = vsel %vm232, %v1877, 0
  %1899 = vmatprep.subr.bf16.mxu0 %v1849
  %1900 = vmatpush1.bf16.msra.mxu0 %v1848
  %1901 = vmatprep.subr.bf16.mxu0 %v1855
  %1902 = vmatpush1.bf16.msra.mxu0 %v1854
  %1903 = vmatprep.subr.bf16.mxu0 %v1861
  %1904 = vmatpush1.bf16.msra.mxu0 %v1860
  %1905 = vmatprep.subr.bf16.mxu0 %v1867
  %1906 = vmatpush1.bf16.msra.mxu0 %v1866
  %1907 = vmatprep.subr.bf16.mxu0 %v1885
  %1908 = vmatpush1.bf16.msra.mxu0 %v1882
  %1909 = vmatprep.subr.bf16.mxu0 0
  %1910 = vmatpush1.bf16.msra.mxu0 0
  %1911 = vmatprep.subr.bf16.mxu0 0
  %1912 = vmatpush1.bf16.msra.mxu0 0
  %1913 = vmatprep.subr.bf16.mxu0 0
  %1914 = vmatpush1.bf16.msra.mxu0 0
  %1915 = vmatprep.subr.bf16.mxu0 0
  %1916 = vmatpush1.bf16.msra.mxu0 0
  %1917 = vmatprep.subr.bf16.mxu0 0
  %1918 = vmatpush1.bf16.msra.mxu0 0
  %1919 = vmatprep.subr.bf16.mxu0 0
  %1920 = vmatpush1.bf16.msra.mxu0 0
  %1921 = vmatprep.subr.bf16.mxu0 0
  %1922 = vmatpush1.bf16.msra.mxu0 0
  %1923 = vmatprep.subr.bf16.mxu0 0
  %1924 = vmatpush1.bf16.msra.mxu0 0
  %1925 = vmatprep.subr.bf16.mxu0 0
  %1926 = vmatpush1.bf16.msra.mxu0 0
  %1927 = vmatprep.subr.bf16.mxu0 0
  %1928 = vmatpush1.bf16.msra.mxu0 0
  %1929 = vmatprep.subr.bf16.mxu0 0
  %1930 = vmatpush1.bf16.msra.mxu0 0
  %1931 = vmatprep.mubr.bf16.mxu0 0
  %1932 = vmatmul.mubr.bf16.gmra.mrb[0].mxu0 %v1879
  %v1933 = vpop.f32.mrb[0].mxu0
  %v1934 = vadd.f32 0.0, %v1933
  %v1935 = vpop.f32.mrb[0].mxu0
  %v1936 = vadd.f32 0.0, %v1935
  %v1937 = vpop.f32.mrb[0].mxu0
  %v1938 = vpop.f32.mrb[0].mxu0
  %1939 = vdwg.mxu0
  %1940 = vmatprep.subr.bf16.mxu0 %v1851
  %1941 = vmatpush1.bf16.msra.mxu0 %v1850
  %1942 = vmatprep.subr.bf16.mxu0 %v1857
  %1943 = vmatpush1.bf16.msra.mxu0 %v1856
  %1944 = vmatprep.subr.bf16.mxu0 %v1863
  %1945 = vmatpush1.bf16.msra.mxu0 %v1862
  %1946 = vmatprep.subr.bf16.mxu0 %v1869
  %1947 = vmatpush1.bf16.msra.mxu0 %v1868
  %1948 = vmatprep.subr.bf16.mxu0 %v1891
  %1949 = vmatpush1.bf16.msra.mxu0 %v1888
  %1950 = vmatprep.subr.bf16.mxu0 0
  %1951 = vmatpush1.bf16.msra.mxu0 0
  %1952 = vmatprep.subr.bf16.mxu0 0
  %1953 = vmatpush1.bf16.msra.mxu0 0
  %1954 = vmatprep.subr.bf16.mxu0 0
  %1955 = vmatpush1.bf16.msra.mxu0 0
  %1956 = vmatprep.subr.bf16.mxu0 0
  %1957 = vmatpush1.bf16.msra.mxu0 0
  %1958 = vmatprep.subr.bf16.mxu0 0
  %1959 = vmatpush1.bf16.msra.mxu0 0
  %1960 = vmatprep.subr.bf16.mxu0 0
  %1961 = vmatpush1.bf16.msra.mxu0 0
  %1962 = vmatprep.subr.bf16.mxu0 0
  %1963 = vmatpush1.bf16.msra.mxu0 0
  %1964 = vmatprep.subr.bf16.mxu0 0
  %1965 = vmatpush1.bf16.msra.mxu0 0
  %1966 = vmatprep.subr.bf16.mxu0 0
  %1967 = vmatpush1.bf16.msra.mxu0 0
  %1968 = vmatprep.subr.bf16.mxu0 0
  %1969 = vmatpush1.bf16.msra.mxu0 0
  %1970 = vmatprep.subr.bf16.mxu0 0
  %1971 = vmatpush1.bf16.msra.mxu0 0
  %1972 = vmatprep.mubr.bf16.mxu0 0
  %1973 = vmatmul.mubr.bf16.gmra.mrb[0].mxu0 %v1879
  %v1974 = vpop.f32.mrb[0].mxu0
  %v1975 = vadd.f32 0.0, %v1974
  %v1976 = vpop.f32.mrb[0].mxu0
  %v1977 = vadd.f32 0.0, %v1976
  %v1978 = vpop.f32.mrb[0].mxu0
  %v1979 = vpop.f32.mrb[0].mxu0
  %1980 = vdwg.mxu0
  %1981 = vmatprep.subr.bf16.mxu0 %v1853
  %1982 = vmatpush1.bf16.msra.mxu0 %v1852
  %1983 = vmatprep.subr.bf16.mxu0 %v1859
  %1984 = vmatpush1.bf16.msra.mxu0 %v1858
  %1985 = vmatprep.subr.bf16.mxu0 %v1865
  %1986 = vmatpush1.bf16.msra.mxu0 %v1864
  %1987 = vmatprep.subr.bf16.mxu0 %v1871
  %1988 = vmatpush1.bf16.msra.mxu0 %v1870
  %1989 = vmatprep.subr.bf16.mxu0 %v1897
  %1990 = vmatpush1.bf16.msra.mxu0 %v1894
  %1991 = vmatprep.subr.bf16.mxu0 0
  %1992 = vmatpush1.bf16.msra.mxu0 0
  %1993 = vmatprep.subr.bf16.mxu0 0
  %1994 = vmatpush1.bf16.msra.mxu0 0
  %1995 = vmatprep.subr.bf16.mxu0 0
  %1996 = vmatpush1.bf16.msra.mxu0 0
  %1997 = vmatprep.subr.bf16.mxu0 0
  %1998 = vmatpush1.bf16.msra.mxu0 0
  %1999 = vmatprep.subr.bf16.mxu0 0
  %2000 = vmatpush1.bf16.msra.mxu0 0
  %2001 = vmatprep.subr.bf16.mxu0 0
  %2002 = vmatpush1.bf16.msra.mxu0 0
  %2003 = vmatprep.subr.bf16.mxu0 0
  %2004 = vmatpush1.bf16.msra.mxu0 0
  %2005 = vmatprep.subr.bf16.mxu0 0
  %2006 = vmatpush1.bf16.msra.mxu0 0
  %2007 = vmatprep.subr.bf16.mxu0 0
  %2008 = vmatpush1.bf16.msra.mxu0 0
  %2009 = vmatprep.subr.bf16.mxu0 0
  %2010 = vmatpush1.bf16.msra.mxu0 0
  %2011 = vmatprep.subr.bf16.mxu0 0
  %2012 = vmatpush1.bf16.msra.mxu0 0
  %2013 = vmatprep.mubr.bf16.mxu0 0
  %2014 = vmatmul.mubr.bf16.gmra.mrb[0].mxu0 %v1879
  %v2015 = vpop.f32.mrb[0].mxu0
  %v2016 = vadd.f32 0.0, %v2015
  %v2017 = vpop.f32.mrb[0].mxu0
  %v2018 = vadd.f32 0.0, %v2017
  %v2019 = vpop.f32.mrb[0].mxu0
  %v2020 = vpop.f32.mrb[0].mxu0
  %2021 = vdwg.mxu0
  %v2022 = vld [vmem:[%s5] sm:$0xff]
  %v2023 = vld [vmem:[%s6] sm:$0xff]
  %v2024 = vld [vmem:[%s8] sm:$0x3f]
  %v2026 = vlaneseq
  %v2027 = vshrl.u32 %v2026, 7
  %v2028 = vsub.s32 0, %v2027
  %v2029 = vrot.slane %v2024, %v2028
  %v2030 = vlaneseq
  %v2031 = vshrl.u32 %v2030, 7
  %v2032 = vsub.s32 1, %v2031
  %v2033 = vrot.slane %v2024, %v2032
  %v2034 = vlaneseq
  %v2035 = vshrl.u32 %v2034, 7
  %v2036 = vsub.s32 2, %v2035
  %v2037 = vrot.slane %v2024, %v2036
  %v2038 = vlaneseq
  %v2039 = vshrl.u32 %v2038, 7
  %v2040 = vsub.s32 3, %v2039
  %v2041 = vrot.slane %v2024, %v2040
  %v2042 = vlaneseq
  %v2043 = vshrl.u32 %v2042, 7
  %v2044 = vsub.s32 4, %v2043
  %v2045 = vrot.slane %v2024, %v2044
  %v2046 = vlaneseq
  %v2047 = vshrl.u32 %v2046, 7
  %v2048 = vsub.s32 5, %v2047
  %v2049 = vrot.slane %v2024, %v2048
  %v2056 = vmul.f32 %v1934, %v2029
  %v2057 = vmul.f32 %v1936, %v2033
  %v2058 = vmul.f32 %v1975, %v2037
  %v2059 = vmul.f32 %v1977, %v2041
  %v2060 = vmul.f32 %v2016, %v2045
  %v2061 = vmul.f32 %v2018, %v2049
  %v2062 = vadd.f32 %v2056, %v2057
  %v2063 = vadd.f32 %v2062, %v2058
  %v2064 = vadd.f32 %v2063, %v2059
  %v2065 = vadd.f32 %v2064, %v2060
  %v2066 = vadd.f32 %v2065, %v2061
  %2067 = vadd.xlane.f32.xlu0 %v2066
  %v2068 = vpop.xlane.xlu0 %2067
  %v2069 = vmul.f32 %v2068, 0.0078125
  %v2070 = vmul.f32 %v2056, %v1934
  %v2071 = vmul.f32 %v2057, %v1936
  %v2072 = vmul.f32 %v2058, %v1975
  %v2073 = vmul.f32 %v2059, %v1977
  %v2074 = vmul.f32 %v2060, %v2016
  %v2075 = vmul.f32 %v2061, %v2018
  %v2076 = vadd.f32 %v2070, %v2071
  %v2077 = vadd.f32 %v2076, %v2072
  %v2078 = vadd.f32 %v2077, %v2073
  %v2079 = vadd.f32 %v2078, %v2074
  %v2080 = vadd.f32 %v2079, %v2075
  %2081 = vadd.xlane.f32.xlu0 %v2080
  %v2082 = vpop.xlane.xlu0 %2081
  %v2083 = vmul.f32 %v2082, 0.0078125
  %v2084 = vmul.f32 %v2069, %v2069
  %v2085 = vsub.f32 %v2083, %v2084
  %v2086 = vadd.f32 %v2085, 1e-05
  %v2087 = vrsqrt.pop %v2086
  %v2088 = vmul.f32 %v2022, %v2087
  %v2089 = vsub.f32 %v1934, %v2069
  %v2090 = vsub.f32 %v1936, %v2069
  %v2091 = vsub.f32 %v1975, %v2069
  %v2092 = vsub.f32 %v1977, %v2069
  %v2093 = vsub.f32 %v2016, %v2069
  %v2094 = vsub.f32 %v2018, %v2069
  %2096 = vset.pattern.permute.xlu0 0
  %2097 = vperm.xlu0 %2096, %v2088
  %v2098 = vpop.permute.xlu0 %2097
  %v2100 = vmul.f32 %v2089, %v2098
  %v2101 = vmul.f32 %v2090, %v2098
  %v2102 = vmul.f32 %v2091, %v2098
  %v2103 = vmul.f32 %v2092, %v2098
  %v2104 = vmul.f32 %v2093, %v2098
  %v2105 = vmul.f32 %v2094, %v2098
  %2107 = vset.pattern.permute.xlu0 0
  %2108 = vperm.xlu0 %2107, %v2023
  %v2109 = vpop.permute.xlu0 %2108
  %v2111 = vadd.f32 %v2100, %v2109
  %v2112 = vadd.f32 %v2101, %v2109
  %v2113 = vadd.f32 %v2102, %v2109
  %v2114 = vadd.f32 %v2103, %v2109
  %v2115 = vadd.f32 %v2104, %v2109
  %v2116 = vadd.f32 %v2105, %v2109
  %vm2117 = vcmp.ge.f32.partialorder %v2111, 0.0
  %vm2118 = vcmp.ge.f32.partialorder %v2112, 0.0
  %vm2119 = vcmp.ge.f32.partialorder %v2113, 0.0
  %vm2120 = vcmp.ge.f32.partialorder %v2114, 0.0
  %vm2121 = vcmp.ge.f32.partialorder %v2115, 0.0
  %vm2122 = vcmp.ge.f32.partialorder %v2116, 0.0
  %v2123 = vmul.f32 %v2111, 0.01
  %v2124 = vmul.f32 %v2112, 0.01
  %v2125 = vmul.f32 %v2113, 0.01
  %v2126 = vmul.f32 %v2114, 0.01
  %v2127 = vmul.f32 %v2115, 0.01
  %v2128 = vmul.f32 %v2116, 0.01
  %v2129 = vsel %vm2117, %v2111, %v2123
  %v2130 = vsel %vm2118, %v2112, %v2124
  %v2131 = vsel %vm2119, %v2113, %v2125
  %v2132 = vsel %vm2120, %v2114, %v2126
  %v2133 = vsel %vm2121, %v2115, %v2127
  %v2134 = vsel %vm2122, %v2116, %v2128
  %2135 = vst [vmem:[%s9] sm:$0xff] %v2129
  %2136 = vst [vmem:[%s9 + $0x8] sm:$0xff] %v2130
  %2137 = vst [vmem:[%s9 + $0x10] sm:$0xff] %v2131
  %2138 = vst [vmem:[%s9 + $0x18] sm:$0xff] %v2132
  %2139 = vst [vmem:[%s9 + $0x20] sm:$0xff] %v2133
  %2140 = vst [vmem:[%s9 + $0x28] sm:$0xff] %v2134
  // Predicated region
  $region38: #{res_block_forward.1} parent=0 // pred_check
    _
  $region39: #{res_block_forward.1} parent=0 // pred_check_branch
    %2142 = sbr.rel (0) target = $region41
  $region40: #{res_block_forward.1} parent=0 // pred_region
    _
  $region41: #{res_block_forward.1} parent=0 // pred_fallthru
    _
  // Predicated region
  $region42: #{res_block_forward.1} parent=0 // pred_check
    _
  $region43: #{res_block_forward.1} parent=0 // pred_check_branch
    %2144 = sbr.rel (0) target = $region45
  $region44: #{res_block_forward.1} parent=0 // pred_region
    _
  $region45: #{res_block_forward.1} parent=0 // pred_fallthru
    _

</llo_original>
